<compile_context>
chip_gen: v5e
topology: v5e:2x2
jax: 0.10.0
libtpu: 0.0.40
codegen_flags: <defaults>
</compile_context>

<pallas_src>
import numpy as np

import jax
import jax.numpy as jnp
from jax.experimental import pallas as pl
from jax.experimental.pallas import tpu as pltpu

C1PACK = 8     # conv1 out-channels (6) padded per-pixel packing
C2PACK = 16    # conv2 out-channels (16) per-pixel packing
C3PACK = 128   # conv3 out-channels (120) padded to a full lane width


# ---------------------------------------------------------------------------
# Parameter init (torch layout) + one-time packing into lane-dense operands
# ---------------------------------------------------------------------------
def init_params(key):
    """Deterministic init mimicking PyTorch default U(-1/sqrt(fan_in), +)."""
    def uni(k, shape, fan_in):
        bound = 1.0 / (fan_in ** 0.5)
        return jax.random.uniform(k, shape, jnp.float32, -bound, bound)

    ks = jax.random.split(key, 10)
    return {
        "conv1_w": uni(ks[0], (6, 1, 5, 5), 1 * 25),
        "conv1_b": uni(ks[1], (6,), 1 * 25),
        "conv2_w": uni(ks[2], (16, 6, 5, 5), 6 * 25),
        "conv2_b": uni(ks[3], (16,), 6 * 25),
        "conv3_w": uni(ks[4], (120, 16, 5, 5), 16 * 25),
        "conv3_b": uni(ks[5], (120,), 16 * 25),
        "fc1_w": uni(ks[6], (84, 120), 120),   # torch Linear: (out, in)
        "fc1_b": uni(ks[7], (84,), 120),
        "fc2_w": uni(ks[8], (10, 84), 84),
        "fc2_b": uni(ks[9], (10,), 84),
    }


def _pad_vec(v, n):
    out = np.zeros((n,), np.float32)
    out[: v.shape[0]] = v
    return out


def _banded_conv(w, row_stride, n_rows, w_out, cout_pack):
    """Pack a (Cout, Cin, K, K) conv weight into K banded matmul matrices.

    The conv input activation is a 2-D (H_in, n_rows) tile whose lane index is
    `wq * row_stride + ci` (wq = input column, ci = input channel).  Matrix i
    computes, for every input row h, the kernel-row-i contribution to every
    (output column wo, output channel co) pair at lane `wo * cout_pack + co`.
    The full conv output row ho is then  sum_i (A @ B_i)[ho + i].
    """
    cout, cin, k, _ = w.shape
    mats = np.zeros((k, n_rows, w_out * cout_pack), np.float32)
    for i in range(k):
        for wo in range(w_out):
            for j in range(k):
                wq = wo + j
                mats[i,
                     wq * row_stride: wq * row_stride + cin,
                     wo * cout_pack: wo * cout_pack + cout] = w[:, :, i, j].T
    return mats


def prepare_params(p):
    """One-time packing of torch-layout params into VMEM-resident operands."""
    w1 = np.asarray(p["conv1_w"], np.float32)
    w2 = np.asarray(p["conv2_w"], np.float32)
    w3 = np.asarray(p["conv3_w"], np.float32)
    b1 = np.asarray(p["conv1_b"], np.float32)
    b2 = np.asarray(p["conv2_b"], np.float32)
    b3 = np.asarray(p["conv3_b"], np.float32)
    f1w = np.asarray(p["fc1_w"], np.float32)   # (84, 120)
    f1b = np.asarray(p["fc1_b"], np.float32)
    f2w = np.asarray(p["fc2_w"], np.float32)   # (10, 84)
    f2b = np.asarray(p["fc2_b"], np.float32)

    # conv1 input: (32, 32) image, lane = input column (single channel).
    w1b = _banded_conv(w1, row_stride=1, n_rows=32, w_out=28, cout_pack=C1PACK)
    # conv2 input: pooled stage-1 activation (14, 27*C1PACK); pooled column t,
    # channel ci live at lane 2*t*C1PACK + ci (odd groups are ignored -> zero rows).
    w2b = _banded_conv(w2, row_stride=2 * C1PACK, n_rows=27 * C1PACK,
                       w_out=10, cout_pack=C2PACK)
    # conv3 input: pooled stage-2 activation (5, 9*C2PACK), lane 2*t*C2PACK + ci.
    w3b = _banded_conv(w3, row_stride=2 * C2PACK, n_rows=9 * C2PACK,
                       w_out=1, cout_pack=C3PACK)

    b1p = np.tile(_pad_vec(b1, C1PACK), 28)[None, :]   # (1, 224)
    b2p = np.tile(_pad_vec(b2, C2PACK), 10)[None, :]   # (1, 160)
    b3p = _pad_vec(b3, C3PACK)[None, :]                # (1, 128)

    f1wp = np.zeros((128, 128), np.float32)
    f1wp[:120, :84] = f1w.T
    f2wp = np.zeros((128, 128), np.float32)
    f2wp[:84, :10] = f2w.T
    f1bp = _pad_vec(f1b, 128)[None, :]
    f2bp = _pad_vec(f2b, 128)[None, :]

    # Even-row selection matrices compacting pooled rows (14<-27 and 5<-9).
    s1 = np.zeros((14, 27), np.float32)
    s1[np.arange(14), 2 * np.arange(14)] = 1.0
    s2 = np.zeros((5, 9), np.float32)
    s2[np.arange(5), 2 * np.arange(5)] = 1.0

    packed = dict(w1b=w1b, b1p=b1p, s1=s1,
                  w2b=w2b, b2p=b2p, s2=s2,
                  w3b=w3b, b3p=b3p,
                  f1w=f1wp, f1b=f1bp, f2w=f2wp, f2b=f2bp)
    return {k: jnp.asarray(v) for k, v in packed.items()}


# ---------------------------------------------------------------------------
# Fused LeNet kernel (one batch element per grid step, everything in VMEM)
# ---------------------------------------------------------------------------
def _lenet_kernel(x_ref, w1_ref, b1_ref, s1_ref,
                  w2_ref, b2_ref, s2_ref,
                  w3_ref, b3_ref,
                  f1w_ref, f1b_ref, f2w_ref, f2b_ref,
                  o_ref):
    f32 = jnp.float32
    x = x_ref[0, 0]                                            # (32, 32)

    # ---- conv1 + ReLU: 5 banded MXU matmuls + vertical shift-add ----------
    a1 = jnp.dot(x, w1_ref[0], preferred_element_type=f32)[0:28, :]
    for i in range(1, 5):
        a1 = a1 + jnp.dot(x, w1_ref[i], preferred_element_type=f32)[i:i + 28, :]
    a1 = jnp.maximum(a1 + b1_ref[...], 0.0)                    # (28, 224) lane = wo*8+co

    # ---- pool1 (2x2, stride 2), fused ---------------------------------------
    h1 = jnp.maximum(a1[:, 0:216], a1[:, 8:224])               # width-pair max
    v1 = jnp.maximum(h1[0:27, :], h1[1:28, :])                 # height-pair max
    p1 = jnp.dot(s1_ref[...], v1, preferred_element_type=f32)  # (14, 216) keep even rows

    # ---- conv2 + ReLU --------------------------------------------------------
    a2 = jnp.dot(p1, w2_ref[0], preferred_element_type=f32)[0:10, :]
    for i in range(1, 5):
        a2 = a2 + jnp.dot(p1, w2_ref[i], preferred_element_type=f32)[i:i + 10, :]
    a2 = jnp.maximum(a2 + b2_ref[...], 0.0)                    # (10, 160) lane = wo*16+co

    # ---- pool2 ---------------------------------------------------------------
    h2 = jnp.maximum(a2[:, 0:144], a2[:, 16:160])
    v2 = jnp.maximum(h2[0:9, :], h2[1:10, :])
    p2 = jnp.dot(s2_ref[...], v2, preferred_element_type=f32)  # (5, 144)

    # ---- conv3 + ReLU -> flattened 120-dim features (padded to 128) ---------
    a3 = jnp.dot(p2, w3_ref[0], preferred_element_type=f32)[0:1, :]
    for i in range(1, 5):
        a3 = a3 + jnp.dot(p2, w3_ref[i], preferred_element_type=f32)[i:i + 1, :]
    a3 = jnp.maximum(a3 + b3_ref[...], 0.0)                    # (1, 128)

    # ---- fc1 + ReLU -> fc2 ---------------------------------------------------
    h = jnp.maximum(
        jnp.dot(a3, f1w_ref[...], preferred_element_type=f32) + f1b_ref[...], 0.0)
    o = jnp.dot(h, f2w_ref[...], preferred_element_type=f32) + f2b_ref[...]  # (1, 128)

    # Lane/sublane-dense unmasked store; logits live in [:, 0, :10].
    o_ref[...] = jnp.broadcast_to(o[None], (1, 8, 128)).astype(o_ref.dtype)


def lenet_forward(pp, x):
    """x: (B, 1, 32, 32) float32 -> logits (B, 10)."""
    B = x.shape[0]
    out = pl.pallas_call(
        _lenet_kernel,
        out_shape=jax.ShapeDtypeStruct((B, 8, 128), jnp.float32),
        grid=(B,),
        in_specs=[
            pl.BlockSpec((1, 1, 32, 32), lambda b: (b, 0, 0, 0)),            # image
            pl.BlockSpec((5, 32, 28 * C1PACK), lambda b: (0, 0, 0)),         # conv1 banded
            pl.BlockSpec((1, 28 * C1PACK), lambda b: (0, 0)),                # conv1 bias
            pl.BlockSpec((14, 27), lambda b: (0, 0)),                        # pool1 row select
            pl.BlockSpec((5, 27 * C1PACK, 10 * C2PACK), lambda b: (0, 0, 0)),  # conv2 banded
            pl.BlockSpec((1, 10 * C2PACK), lambda b: (0, 0)),                # conv2 bias
            pl.BlockSpec((5, 9), lambda b: (0, 0)),                          # pool2 row select
            pl.BlockSpec((5, 9 * C2PACK, C3PACK), lambda b: (0, 0, 0)),      # conv3 banded
            pl.BlockSpec((1, C3PACK), lambda b: (0, 0)),                     # conv3 bias
            pl.BlockSpec((128, 128), lambda b: (0, 0)),                      # fc1 W (padded)
            pl.BlockSpec((1, 128), lambda b: (0, 0)),                        # fc1 b
            pl.BlockSpec((128, 128), lambda b: (0, 0)),                      # fc2 W (padded)
            pl.BlockSpec((1, 128), lambda b: (0, 0)),                        # fc2 b
        ],
        out_specs=pl.BlockSpec((1, 8, 128), lambda b: (b, 0, 0)),
        compiler_params=pltpu.CompilerParams(
            dimension_semantics=("parallel",)),
    )(x, pp["w1b"], pp["b1p"], pp["s1"],
      pp["w2b"], pp["b2p"], pp["s2"],
      pp["w3b"], pp["b3p"],
      pp["f1w"], pp["f1b"], pp["f2w"], pp["f2b"])
    return out[:, 0, :10]


# ---------------------------------------------------------------------------
# Pure-JAX reference (PyTorch semantics) for validation
# ---------------------------------------------------------------------------
def lenet_reference(p, x):
    def conv(h, w, b):
        dn = jax.lax.conv_dimension_numbers(h.shape, w.shape,
                                            ("NCHW", "OIHW", "NCHW"))
        out = jax.lax.conv_general_dilated(h, w, (1, 1), "VALID",
                                           dimension_numbers=dn)
        return out + b[None, :, None, None]

    def pool(h):
        B, C, H, W = h.shape
        return h.reshape(B, C, H // 2, 2, W // 2, 2).max(axis=(3, 5))

    out = pool(jnp.maximum(conv(x, p["conv1_w"], p["conv1_b"]), 0.0))
    out = pool(jnp.maximum(conv(out, p["conv2_w"], p["conv2_b"]), 0.0))
    out = jnp.maximum(conv(out, p["conv3_w"], p["conv3_b"]), 0.0)
    out = out.reshape(out.shape[0], -1)
    out = jnp.maximum(out @ p["fc1_w"].T + p["fc1_b"], 0.0)
    return out @ p["fc2_w"].T + p["fc2_b"]


if __name__ == "__main__":
    key = jax.random.PRNGKey(0)
    pkey, xkey = jax.random.split(key)
    params = init_params(pkey)
    packed = prepare_params(params)

    # LeNet-MNIST forward implies 1x32x32 inputs (conv3 needs a 5x5 map left).
    x = jax.random.normal(xkey, (8, 1, 32, 32), jnp.float32)

    out = jax.jit(lenet_forward)(packed, x)
    out = jax.block_until_ready(out)
    assert out.shape == (8, 10) and out.dtype == jnp.float32

    ref = jax.block_until_ready(jax.jit(lenet_reference)(params, x))
    max_err = float(jnp.max(jnp.abs(out - ref)))
    if not bool(jnp.allclose(out, ref, rtol=5e-2, atol=5e-2)):
        raise AssertionError(
            f"Pallas LeNet mismatch vs XLA reference (max abs err {max_err:.3e})")
    print("KERNEL_OK")
</pallas_src>

<mosaic_0001>
module attributes {stable_mosaic.version = 11 : i64} {
  func.func @_lenet_kernel(%arg0: i32, %arg1: memref<1x1x32x32xf32, #tpu.memory_space<vmem>>, %arg2: memref<5x32x224xf32, #tpu.memory_space<vmem>>, %arg3: memref<1x224xf32, #tpu.memory_space<vmem>>, %arg4: memref<14x27xf32, #tpu.memory_space<vmem>>, %arg5: memref<5x216x160xf32, #tpu.memory_space<vmem>>, %arg6: memref<1x160xf32, #tpu.memory_space<vmem>>, %arg7: memref<5x9xf32, #tpu.memory_space<vmem>>, %arg8: memref<5x144x128xf32, #tpu.memory_space<vmem>>, %arg9: memref<1x128xf32, #tpu.memory_space<vmem>>, %arg10: memref<128x128xf32, #tpu.memory_space<vmem>>, %arg11: memref<1x128xf32, #tpu.memory_space<vmem>>, %arg12: memref<128x128xf32, #tpu.memory_space<vmem>>, %arg13: memref<1x128xf32, #tpu.memory_space<vmem>>, %arg14: memref<1x8x128xf32, #tpu.memory_space<vmem>>) attributes {dimension_semantics = [#tpu.dimension_semantics<parallel>], iteration_bounds = array<i64: 8>, scalar_prefetch = 0 : i64, scratch_operands = 0 : i64, tpu.core_type = #tpu.core_type<tc>, window_params = [{transform_indices = @transform_0, window_bounds = array<i64: 1, 1, 32, 32>}, {pipeline_mode = #tpu.pipeline_mode<synchronous>, transform_indices = @transform_1, window_bounds = array<i64: 5, 32, 224>}, {pipeline_mode = #tpu.pipeline_mode<synchronous>, transform_indices = @transform_2, window_bounds = array<i64: 1, 224>}, {pipeline_mode = #tpu.pipeline_mode<synchronous>, transform_indices = @transform_3, window_bounds = array<i64: 14, 27>}, {pipeline_mode = #tpu.pipeline_mode<synchronous>, transform_indices = @transform_4, window_bounds = array<i64: 5, 216, 160>}, {pipeline_mode = #tpu.pipeline_mode<synchronous>, transform_indices = @transform_5, window_bounds = array<i64: 1, 160>}, {pipeline_mode = #tpu.pipeline_mode<synchronous>, transform_indices = @transform_6, window_bounds = array<i64: 5, 9>}, {pipeline_mode = #tpu.pipeline_mode<synchronous>, transform_indices = @transform_7, window_bounds = array<i64: 5, 144, 128>}, {pipeline_mode = #tpu.pipeline_mode<synchronous>, transform_indices = @transform_8, window_bounds = array<i64: 1, 128>}, {pipeline_mode = #tpu.pipeline_mode<synchronous>, transform_indices = @transform_9, window_bounds = array<i64: 128, 128>}, {pipeline_mode = #tpu.pipeline_mode<synchronous>, transform_indices = @transform_10, window_bounds = array<i64: 1, 128>}, {pipeline_mode = #tpu.pipeline_mode<synchronous>, transform_indices = @transform_11, window_bounds = array<i64: 128, 128>}, {pipeline_mode = #tpu.pipeline_mode<synchronous>, transform_indices = @transform_12, window_bounds = array<i64: 1, 128>}, {transform_indices = @transform_13, window_bounds = array<i64: 1, 8, 128>}]} {
    %c0 = arith.constant 0 : index
    %c0_0 = arith.constant 0 : index
    %c0_1 = arith.constant 0 : index
    %c0_2 = arith.constant 0 : index
    %0 = vector.load %arg1[%c0, %c0_0, %c0_1, %c0_2] : memref<1x1x32x32xf32, #tpu.memory_space<vmem>>, vector<1x1x32x32xf32>
    %1 = vector.shape_cast %0 : vector<1x1x32x32xf32> to vector<32x32xf32>
    %c0_3 = arith.constant 0 : index
    %c0_4 = arith.constant 0 : index
    %c0_5 = arith.constant 0 : index
    %2 = vector.load %arg2[%c0_3, %c0_4, %c0_5] : memref<5x32x224xf32, #tpu.memory_space<vmem>>, vector<1x32x224xf32>
    %3 = vector.shape_cast %2 : vector<1x32x224xf32> to vector<32x224xf32>
    %cst = arith.constant dense<0.000000e+00> : vector<32x224xf32>
    %4 = tpu.matmul %1, %3, %cst {dimension_numbers = #tpu.dot_dimension_numbers<[1], [0], [0], [1], [0, 0, 1, 1], [], []>} : vector<32x32xf32>, vector<32x224xf32>, vector<32x224xf32> -> vector<32x224xf32>
    %5 = vector.extract_strided_slice %4 {offsets = [0, 0], sizes = [28, 224], strides = [1, 1]} : vector<32x224xf32> to vector<28x224xf32>
    %c1 = arith.constant 1 : index
    %c0_6 = arith.constant 0 : index
    %c0_7 = arith.constant 0 : index
    %6 = vector.load %arg2[%c1, %c0_6, %c0_7] : memref<5x32x224xf32, #tpu.memory_space<vmem>>, vector<1x32x224xf32>
    %7 = vector.shape_cast %6 : vector<1x32x224xf32> to vector<32x224xf32>
    %cst_8 = arith.constant dense<0.000000e+00> : vector<32x224xf32>
    %8 = tpu.matmul %1, %7, %cst_8 {dimension_numbers = #tpu.dot_dimension_numbers<[1], [0], [0], [1], [0, 0, 1, 1], [], []>} : vector<32x32xf32>, vector<32x224xf32>, vector<32x224xf32> -> vector<32x224xf32>
    %9 = vector.extract_strided_slice %8 {offsets = [1, 0], sizes = [28, 224], strides = [1, 1]} : vector<32x224xf32> to vector<28x224xf32>
    %10 = arith.addf %5, %9 : vector<28x224xf32>
    %c2 = arith.constant 2 : index
    %c0_9 = arith.constant 0 : index
    %c0_10 = arith.constant 0 : index
    %11 = vector.load %arg2[%c2, %c0_9, %c0_10] : memref<5x32x224xf32, #tpu.memory_space<vmem>>, vector<1x32x224xf32>
    %12 = vector.shape_cast %11 : vector<1x32x224xf32> to vector<32x224xf32>
    %cst_11 = arith.constant dense<0.000000e+00> : vector<32x224xf32>
    %13 = tpu.matmul %1, %12, %cst_11 {dimension_numbers = #tpu.dot_dimension_numbers<[1], [0], [0], [1], [0, 0, 1, 1], [], []>} : vector<32x32xf32>, vector<32x224xf32>, vector<32x224xf32> -> vector<32x224xf32>
    %14 = vector.extract_strided_slice %13 {offsets = [2, 0], sizes = [28, 224], strides = [1, 1]} : vector<32x224xf32> to vector<28x224xf32>
    %15 = arith.addf %10, %14 : vector<28x224xf32>
    %c3 = arith.constant 3 : index
    %c0_12 = arith.constant 0 : index
    %c0_13 = arith.constant 0 : index
    %16 = vector.load %arg2[%c3, %c0_12, %c0_13] : memref<5x32x224xf32, #tpu.memory_space<vmem>>, vector<1x32x224xf32>
    %17 = vector.shape_cast %16 : vector<1x32x224xf32> to vector<32x224xf32>
    %cst_14 = arith.constant dense<0.000000e+00> : vector<32x224xf32>
    %18 = tpu.matmul %1, %17, %cst_14 {dimension_numbers = #tpu.dot_dimension_numbers<[1], [0], [0], [1], [0, 0, 1, 1], [], []>} : vector<32x32xf32>, vector<32x224xf32>, vector<32x224xf32> -> vector<32x224xf32>
    %19 = vector.extract_strided_slice %18 {offsets = [3, 0], sizes = [28, 224], strides = [1, 1]} : vector<32x224xf32> to vector<28x224xf32>
    %20 = arith.addf %15, %19 : vector<28x224xf32>
    %c4 = arith.constant 4 : index
    %c0_15 = arith.constant 0 : index
    %c0_16 = arith.constant 0 : index
    %21 = vector.load %arg2[%c4, %c0_15, %c0_16] : memref<5x32x224xf32, #tpu.memory_space<vmem>>, vector<1x32x224xf32>
    %22 = vector.shape_cast %21 : vector<1x32x224xf32> to vector<32x224xf32>
    %cst_17 = arith.constant dense<0.000000e+00> : vector<32x224xf32>
    %23 = tpu.matmul %1, %22, %cst_17 {dimension_numbers = #tpu.dot_dimension_numbers<[1], [0], [0], [1], [0, 0, 1, 1], [], []>} : vector<32x32xf32>, vector<32x224xf32>, vector<32x224xf32> -> vector<32x224xf32>
    %24 = vector.extract_strided_slice %23 {offsets = [4, 0], sizes = [28, 224], strides = [1, 1]} : vector<32x224xf32> to vector<28x224xf32>
    %25 = arith.addf %20, %24 : vector<28x224xf32>
    %c0_18 = arith.constant 0 : index
    %c0_19 = arith.constant 0 : index
    %26 = vector.load %arg3[%c0_18, %c0_19] : memref<1x224xf32, #tpu.memory_space<vmem>>, vector<1x224xf32>
    %27 = vector.broadcast %26 : vector<1x224xf32> to vector<28x224xf32>
    %28 = arith.addf %25, %27 : vector<28x224xf32>
    %cst_20 = arith.constant 0.000000e+00 : f32
    %29 = vector.broadcast %cst_20 : f32 to vector<28x224xf32>
    %30 = arith.maximumf %28, %29 : vector<28x224xf32>
    %31 = vector.extract_strided_slice %30 {offsets = [0, 0], sizes = [28, 216], strides = [1, 1]} : vector<28x224xf32> to vector<28x216xf32>
    %32 = vector.extract_strided_slice %30 {offsets = [0, 8], sizes = [28, 216], strides = [1, 1]} : vector<28x224xf32> to vector<28x216xf32>
    %33 = arith.maximumf %31, %32 : vector<28x216xf32>
    %34 = vector.extract_strided_slice %33 {offsets = [0, 0], sizes = [27, 216], strides = [1, 1]} : vector<28x216xf32> to vector<27x216xf32>
    %35 = vector.extract_strided_slice %33 {offsets = [1, 0], sizes = [27, 216], strides = [1, 1]} : vector<28x216xf32> to vector<27x216xf32>
    %36 = arith.maximumf %34, %35 : vector<27x216xf32>
    %c0_21 = arith.constant 0 : index
    %c0_22 = arith.constant 0 : index
    %37 = vector.load %arg4[%c0_21, %c0_22] : memref<14x27xf32, #tpu.memory_space<vmem>>, vector<14x27xf32>
    %cst_23 = arith.constant dense<0.000000e+00> : vector<14x216xf32>
    %38 = tpu.matmul %37, %36, %cst_23 {dimension_numbers = #tpu.dot_dimension_numbers<[1], [0], [0], [1], [0, 0, 1, 1], [], []>} : vector<14x27xf32>, vector<27x216xf32>, vector<14x216xf32> -> vector<14x216xf32>
    %c0_24 = arith.constant 0 : index
    %c0_25 = arith.constant 0 : index
    %c0_26 = arith.constant 0 : index
    %39 = vector.load %arg5[%c0_24, %c0_25, %c0_26] : memref<5x216x160xf32, #tpu.memory_space<vmem>>, vector<1x216x160xf32>
    %40 = vector.shape_cast %39 : vector<1x216x160xf32> to vector<216x160xf32>
    %cst_27 = arith.constant dense<0.000000e+00> : vector<14x160xf32>
    %41 = tpu.matmul %38, %40, %cst_27 {dimension_numbers = #tpu.dot_dimension_numbers<[1], [0], [0], [1], [0, 0, 1, 1], [], []>} : vector<14x216xf32>, vector<216x160xf32>, vector<14x160xf32> -> vector<14x160xf32>
    %42 = vector.extract_strided_slice %41 {offsets = [0, 0], sizes = [10, 160], strides = [1, 1]} : vector<14x160xf32> to vector<10x160xf32>
    %c1_28 = arith.constant 1 : index
    %c0_29 = arith.constant 0 : index
    %c0_30 = arith.constant 0 : index
    %43 = vector.load %arg5[%c1_28, %c0_29, %c0_30] : memref<5x216x160xf32, #tpu.memory_space<vmem>>, vector<1x216x160xf32>
    %44 = vector.shape_cast %43 : vector<1x216x160xf32> to vector<216x160xf32>
    %cst_31 = arith.constant dense<0.000000e+00> : vector<14x160xf32>
    %45 = tpu.matmul %38, %44, %cst_31 {dimension_numbers = #tpu.dot_dimension_numbers<[1], [0], [0], [1], [0, 0, 1, 1], [], []>} : vector<14x216xf32>, vector<216x160xf32>, vector<14x160xf32> -> vector<14x160xf32>
    %46 = vector.extract_strided_slice %45 {offsets = [1, 0], sizes = [10, 160], strides = [1, 1]} : vector<14x160xf32> to vector<10x160xf32>
    %47 = arith.addf %42, %46 : vector<10x160xf32>
    %c2_32 = arith.constant 2 : index
    %c0_33 = arith.constant 0 : index
    %c0_34 = arith.constant 0 : index
    %48 = vector.load %arg5[%c2_32, %c0_33, %c0_34] : memref<5x216x160xf32, #tpu.memory_space<vmem>>, vector<1x216x160xf32>
    %49 = vector.shape_cast %48 : vector<1x216x160xf32> to vector<216x160xf32>
    %cst_35 = arith.constant dense<0.000000e+00> : vector<14x160xf32>
    %50 = tpu.matmul %38, %49, %cst_35 {dimension_numbers = #tpu.dot_dimension_numbers<[1], [0], [0], [1], [0, 0, 1, 1], [], []>} : vector<14x216xf32>, vector<216x160xf32>, vector<14x160xf32> -> vector<14x160xf32>
    %51 = vector.extract_strided_slice %50 {offsets = [2, 0], sizes = [10, 160], strides = [1, 1]} : vector<14x160xf32> to vector<10x160xf32>
    %52 = arith.addf %47, %51 : vector<10x160xf32>
    %c3_36 = arith.constant 3 : index
    %c0_37 = arith.constant 0 : index
    %c0_38 = arith.constant 0 : index
    %53 = vector.load %arg5[%c3_36, %c0_37, %c0_38] : memref<5x216x160xf32, #tpu.memory_space<vmem>>, vector<1x216x160xf32>
    %54 = vector.shape_cast %53 : vector<1x216x160xf32> to vector<216x160xf32>
    %cst_39 = arith.constant dense<0.000000e+00> : vector<14x160xf32>
    %55 = tpu.matmul %38, %54, %cst_39 {dimension_numbers = #tpu.dot_dimension_numbers<[1], [0], [0], [1], [0, 0, 1, 1], [], []>} : vector<14x216xf32>, vector<216x160xf32>, vector<14x160xf32> -> vector<14x160xf32>
    %56 = vector.extract_strided_slice %55 {offsets = [3, 0], sizes = [10, 160], strides = [1, 1]} : vector<14x160xf32> to vector<10x160xf32>
    %57 = arith.addf %52, %56 : vector<10x160xf32>
    %c4_40 = arith.constant 4 : index
    %c0_41 = arith.constant 0 : index
    %c0_42 = arith.constant 0 : index
    %58 = vector.load %arg5[%c4_40, %c0_41, %c0_42] : memref<5x216x160xf32, #tpu.memory_space<vmem>>, vector<1x216x160xf32>
    %59 = vector.shape_cast %58 : vector<1x216x160xf32> to vector<216x160xf32>
    %cst_43 = arith.constant dense<0.000000e+00> : vector<14x160xf32>
    %60 = tpu.matmul %38, %59, %cst_43 {dimension_numbers = #tpu.dot_dimension_numbers<[1], [0], [0], [1], [0, 0, 1, 1], [], []>} : vector<14x216xf32>, vector<216x160xf32>, vector<14x160xf32> -> vector<14x160xf32>
    %61 = vector.extract_strided_slice %60 {offsets = [4, 0], sizes = [10, 160], strides = [1, 1]} : vector<14x160xf32> to vector<10x160xf32>
    %62 = arith.addf %57, %61 : vector<10x160xf32>
    %c0_44 = arith.constant 0 : index
    %c0_45 = arith.constant 0 : index
    %63 = vector.load %arg6[%c0_44, %c0_45] : memref<1x160xf32, #tpu.memory_space<vmem>>, vector<1x160xf32>
    %64 = vector.broadcast %63 : vector<1x160xf32> to vector<10x160xf32>
    %65 = arith.addf %62, %64 : vector<10x160xf32>
    %cst_46 = arith.constant 0.000000e+00 : f32
    %66 = vector.broadcast %cst_46 : f32 to vector<10x160xf32>
    %67 = arith.maximumf %65, %66 : vector<10x160xf32>
    %68 = vector.extract_strided_slice %67 {offsets = [0, 0], sizes = [10, 144], strides = [1, 1]} : vector<10x160xf32> to vector<10x144xf32>
    %69 = vector.extract_strided_slice %67 {offsets = [0, 16], sizes = [10, 144], strides = [1, 1]} : vector<10x160xf32> to vector<10x144xf32>
    %70 = arith.maximumf %68, %69 : vector<10x144xf32>
    %71 = vector.extract_strided_slice %70 {offsets = [0, 0], sizes = [9, 144], strides = [1, 1]} : vector<10x144xf32> to vector<9x144xf32>
    %72 = vector.extract_strided_slice %70 {offsets = [1, 0], sizes = [9, 144], strides = [1, 1]} : vector<10x144xf32> to vector<9x144xf32>
    %73 = arith.maximumf %71, %72 : vector<9x144xf32>
    %c0_47 = arith.constant 0 : index
    %c0_48 = arith.constant 0 : index
    %74 = vector.load %arg7[%c0_47, %c0_48] : memref<5x9xf32, #tpu.memory_space<vmem>>, vector<5x9xf32>
    %cst_49 = arith.constant dense<0.000000e+00> : vector<5x144xf32>
    %75 = tpu.matmul %74, %73, %cst_49 {dimension_numbers = #tpu.dot_dimension_numbers<[1], [0], [0], [1], [0, 0, 1, 1], [], []>} : vector<5x9xf32>, vector<9x144xf32>, vector<5x144xf32> -> vector<5x144xf32>
    %c0_50 = arith.constant 0 : index
    %c0_51 = arith.constant 0 : index
    %c0_52 = arith.constant 0 : index
    %76 = vector.load %arg8[%c0_50, %c0_51, %c0_52] : memref<5x144x128xf32, #tpu.memory_space<vmem>>, vector<1x144x128xf32>
    %77 = vector.shape_cast %76 : vector<1x144x128xf32> to vector<144x128xf32>
    %cst_53 = arith.constant dense<0.000000e+00> : vector<5x128xf32>
    %78 = tpu.matmul %75, %77, %cst_53 {dimension_numbers = #tpu.dot_dimension_numbers<[1], [0], [0], [1], [0, 0, 1, 1], [], []>} : vector<5x144xf32>, vector<144x128xf32>, vector<5x128xf32> -> vector<5x128xf32>
    %79 = vector.extract_strided_slice %78 {offsets = [0, 0], sizes = [1, 128], strides = [1, 1]} : vector<5x128xf32> to vector<1x128xf32>
    %c1_54 = arith.constant 1 : index
    %c0_55 = arith.constant 0 : index
    %c0_56 = arith.constant 0 : index
    %80 = vector.load %arg8[%c1_54, %c0_55, %c0_56] : memref<5x144x128xf32, #tpu.memory_space<vmem>>, vector<1x144x128xf32>
    %81 = vector.shape_cast %80 : vector<1x144x128xf32> to vector<144x128xf32>
    %cst_57 = arith.constant dense<0.000000e+00> : vector<5x128xf32>
    %82 = tpu.matmul %75, %81, %cst_57 {dimension_numbers = #tpu.dot_dimension_numbers<[1], [0], [0], [1], [0, 0, 1, 1], [], []>} : vector<5x144xf32>, vector<144x128xf32>, vector<5x128xf32> -> vector<5x128xf32>
    %83 = vector.extract_strided_slice %82 {offsets = [1, 0], sizes = [1, 128], strides = [1, 1]} : vector<5x128xf32> to vector<1x128xf32>
    %84 = arith.addf %79, %83 : vector<1x128xf32>
    %c2_58 = arith.constant 2 : index
    %c0_59 = arith.constant 0 : index
    %c0_60 = arith.constant 0 : index
    %85 = vector.load %arg8[%c2_58, %c0_59, %c0_60] : memref<5x144x128xf32, #tpu.memory_space<vmem>>, vector<1x144x128xf32>
    %86 = vector.shape_cast %85 : vector<1x144x128xf32> to vector<144x128xf32>
    %cst_61 = arith.constant dense<0.000000e+00> : vector<5x128xf32>
    %87 = tpu.matmul %75, %86, %cst_61 {dimension_numbers = #tpu.dot_dimension_numbers<[1], [0], [0], [1], [0, 0, 1, 1], [], []>} : vector<5x144xf32>, vector<144x128xf32>, vector<5x128xf32> -> vector<5x128xf32>
    %88 = vector.extract_strided_slice %87 {offsets = [2, 0], sizes = [1, 128], strides = [1, 1]} : vector<5x128xf32> to vector<1x128xf32>
    %89 = arith.addf %84, %88 : vector<1x128xf32>
    %c3_62 = arith.constant 3 : index
    %c0_63 = arith.constant 0 : index
    %c0_64 = arith.constant 0 : index
    %90 = vector.load %arg8[%c3_62, %c0_63, %c0_64] : memref<5x144x128xf32, #tpu.memory_space<vmem>>, vector<1x144x128xf32>
    %91 = vector.shape_cast %90 : vector<1x144x128xf32> to vector<144x128xf32>
    %cst_65 = arith.constant dense<0.000000e+00> : vector<5x128xf32>
    %92 = tpu.matmul %75, %91, %cst_65 {dimension_numbers = #tpu.dot_dimension_numbers<[1], [0], [0], [1], [0, 0, 1, 1], [], []>} : vector<5x144xf32>, vector<144x128xf32>, vector<5x128xf32> -> vector<5x128xf32>
    %93 = vector.extract_strided_slice %92 {offsets = [3, 0], sizes = [1, 128], strides = [1, 1]} : vector<5x128xf32> to vector<1x128xf32>
    %94 = arith.addf %89, %93 : vector<1x128xf32>
    %c4_66 = arith.constant 4 : index
    %c0_67 = arith.constant 0 : index
    %c0_68 = arith.constant 0 : index
    %95 = vector.load %arg8[%c4_66, %c0_67, %c0_68] : memref<5x144x128xf32, #tpu.memory_space<vmem>>, vector<1x144x128xf32>
    %96 = vector.shape_cast %95 : vector<1x144x128xf32> to vector<144x128xf32>
    %cst_69 = arith.constant dense<0.000000e+00> : vector<5x128xf32>
    %97 = tpu.matmul %75, %96, %cst_69 {dimension_numbers = #tpu.dot_dimension_numbers<[1], [0], [0], [1], [0, 0, 1, 1], [], []>} : vector<5x144xf32>, vector<144x128xf32>, vector<5x128xf32> -> vector<5x128xf32>
    %98 = vector.extract_strided_slice %97 {offsets = [4, 0], sizes = [1, 128], strides = [1, 1]} : vector<5x128xf32> to vector<1x128xf32>
    %99 = arith.addf %94, %98 : vector<1x128xf32>
    %c0_70 = arith.constant 0 : index
    %c0_71 = arith.constant 0 : index
    %100 = vector.load %arg9[%c0_70, %c0_71] : memref<1x128xf32, #tpu.memory_space<vmem>>, vector<1x128xf32>
    %101 = arith.addf %99, %100 : vector<1x128xf32>
    %cst_72 = arith.constant 0.000000e+00 : f32
    %102 = vector.broadcast %cst_72 : f32 to vector<1x128xf32>
    %103 = arith.maximumf %101, %102 : vector<1x128xf32>
    %c0_73 = arith.constant 0 : index
    %c0_74 = arith.constant 0 : index
    %104 = vector.load %arg10[%c0_73, %c0_74] : memref<128x128xf32, #tpu.memory_space<vmem>>, vector<128x128xf32>
    %cst_75 = arith.constant dense<0.000000e+00> : vector<1x128xf32>
    %105 = tpu.matmul %103, %104, %cst_75 {dimension_numbers = #tpu.dot_dimension_numbers<[1], [0], [0], [1], [0, 0, 1, 1], [], []>} : vector<1x128xf32>, vector<128x128xf32>, vector<1x128xf32> -> vector<1x128xf32>
    %c0_76 = arith.constant 0 : index
    %c0_77 = arith.constant 0 : index
    %106 = vector.load %arg11[%c0_76, %c0_77] : memref<1x128xf32, #tpu.memory_space<vmem>>, vector<1x128xf32>
    %107 = arith.addf %105, %106 : vector<1x128xf32>
    %cst_78 = arith.constant 0.000000e+00 : f32
    %108 = vector.broadcast %cst_78 : f32 to vector<1x128xf32>
    %109 = arith.maximumf %107, %108 : vector<1x128xf32>
    %c0_79 = arith.constant 0 : index
    %c0_80 = arith.constant 0 : index
    %110 = vector.load %arg12[%c0_79, %c0_80] : memref<128x128xf32, #tpu.memory_space<vmem>>, vector<128x128xf32>
    %cst_81 = arith.constant dense<0.000000e+00> : vector<1x128xf32>
    %111 = tpu.matmul %109, %110, %cst_81 {dimension_numbers = #tpu.dot_dimension_numbers<[1], [0], [0], [1], [0, 0, 1, 1], [], []>} : vector<1x128xf32>, vector<128x128xf32>, vector<1x128xf32> -> vector<1x128xf32>
    %c0_82 = arith.constant 0 : index
    %c0_83 = arith.constant 0 : index
    %112 = vector.load %arg13[%c0_82, %c0_83] : memref<1x128xf32, #tpu.memory_space<vmem>>, vector<1x128xf32>
    %113 = arith.addf %111, %112 : vector<1x128xf32>
    %114 = vector.shape_cast %113 : vector<1x128xf32> to vector<1x1x128xf32>
    %115 = vector.shape_cast %114 : vector<1x1x128xf32> to vector<1x1x128xf32>
    %116 = vector.broadcast %115 : vector<1x1x128xf32> to vector<1x8x128xf32>
    %c0_84 = arith.constant 0 : index
    %c0_85 = arith.constant 0 : index
    %c0_86 = arith.constant 0 : index
    %117 = vector.load %arg14[%c0_84, %c0_85, %c0_86] : memref<1x8x128xf32, #tpu.memory_space<vmem>>, vector<1x8x128xf32>
    tpu.vector_store %arg14[%c0_84, %c0_85, %c0_86], %116 {strides = array<i32>} : memref<1x8x128xf32, #tpu.memory_space<vmem>>, vector<1x8x128xf32>,
    return
  }
  func.func @transform_0(%arg0: i32) -> (i32, i32, i32, i32) {
    %c0_i32 = arith.constant 0 : i32
    %c0_i32_0 = arith.constant 0 : i32
    %c0_i32_1 = arith.constant 0 : i32
    %c0_i32_2 = arith.constant 0 : i32
    return %arg0, %c0_i32, %c0_i32_0, %c0_i32_1 : i32, i32, i32, i32
  }
  func.func @transform_1(%arg0: i32) -> (i32, i32, i32) {
    %c0_i32 = arith.constant 0 : i32
    %c0_i32_0 = arith.constant 0 : i32
    %c0_i32_1 = arith.constant 0 : i32
    %c0_i32_2 = arith.constant 0 : i32
    return %c0_i32, %c0_i32_0, %c0_i32_1 : i32, i32, i32
  }
  func.func @transform_2(%arg0: i32) -> (i32, i32) {
    %c0_i32 = arith.constant 0 : i32
    %c0_i32_0 = arith.constant 0 : i32
    %c0_i32_1 = arith.constant 0 : i32
    return %c0_i32, %c0_i32_0 : i32, i32
  }
  func.func @transform_3(%arg0: i32) -> (i32, i32) {
    %c0_i32 = arith.constant 0 : i32
    %c0_i32_0 = arith.constant 0 : i32
    %c0_i32_1 = arith.constant 0 : i32
    return %c0_i32, %c0_i32_0 : i32, i32
  }
  func.func @transform_4(%arg0: i32) -> (i32, i32, i32) {
    %c0_i32 = arith.constant 0 : i32
    %c0_i32_0 = arith.constant 0 : i32
    %c0_i32_1 = arith.constant 0 : i32
    %c0_i32_2 = arith.constant 0 : i32
    return %c0_i32, %c0_i32_0, %c0_i32_1 : i32, i32, i32
  }
  func.func @transform_5(%arg0: i32) -> (i32, i32) {
    %c0_i32 = arith.constant 0 : i32
    %c0_i32_0 = arith.constant 0 : i32
    %c0_i32_1 = arith.constant 0 : i32
    return %c0_i32, %c0_i32_0 : i32, i32
  }
  func.func @transform_6(%arg0: i32) -> (i32, i32) {
    %c0_i32 = arith.constant 0 : i32
    %c0_i32_0 = arith.constant 0 : i32
    %c0_i32_1 = arith.constant 0 : i32
    return %c0_i32, %c0_i32_0 : i32, i32
  }
  func.func @transform_7(%arg0: i32) -> (i32, i32, i32) {
    %c0_i32 = arith.constant 0 : i32
    %c0_i32_0 = arith.constant 0 : i32
    %c0_i32_1 = arith.constant 0 : i32
    %c0_i32_2 = arith.constant 0 : i32
    return %c0_i32, %c0_i32_0, %c0_i32_1 : i32, i32, i32
  }
  func.func @transform_8(%arg0: i32) -> (i32, i32) {
    %c0_i32 = arith.constant 0 : i32
    %c0_i32_0 = arith.constant 0 : i32
    %c0_i32_1 = arith.constant 0 : i32
    return %c0_i32, %c0_i32_0 : i32, i32
  }
  func.func @transform_9(%arg0: i32) -> (i32, i32) {
    %c0_i32 = arith.constant 0 : i32
    %c0_i32_0 = arith.constant 0 : i32
    %c0_i32_1 = arith.constant 0 : i32
    return %c0_i32, %c0_i32_0 : i32, i32
  }
  func.func @transform_10(%arg0: i32) -> (i32, i32) {
    %c0_i32 = arith.constant 0 : i32
    %c0_i32_0 = arith.constant 0 : i32
    %c0_i32_1 = arith.constant 0 : i32
    return %c0_i32, %c0_i32_0 : i32, i32
  }
  func.func @transform_11(%arg0: i32) -> (i32, i32) {
    %c0_i32 = arith.constant 0 : i32
    %c0_i32_0 = arith.constant 0 : i32
    %c0_i32_1 = arith.constant 0 : i32
    return %c0_i32, %c0_i32_0 : i32, i32
  }
  func.func @transform_12(%arg0: i32) -> (i32, i32) {
    %c0_i32 = arith.constant 0 : i32
    %c0_i32_0 = arith.constant 0 : i32
    %c0_i32_1 = arith.constant 0 : i32
    return %c0_i32, %c0_i32_0 : i32, i32
  }
  func.func @transform_13(%arg0: i32) -> (i32, i32, i32) {
    %c0_i32 = arith.constant 0 : i32
    %c0_i32_0 = arith.constant 0 : i32
    %c0_i32_1 = arith.constant 0 : i32
    return %arg0, %c0_i32, %c0_i32_0 : i32, i32, i32
  }
}

</mosaic_0001>

<llo_original>
// kernel: lenet_forward.1
$region0: #{lenet_forward.1}
  #allocation0 [shape = 'u32[]', space=smem, size = 0x4, offset = 0x4, fixed_abs, tag = 'smem constant byte address 0x4 - core index']
  #allocation1 [shape = 'u32[72,128]{1,0:T(1,128)}', space=vmem, size = 0x9000, scoped, tag = 'internal scratch']
  %s0 = inlined_call_operand.vmem [shape: f32[8,1,32,32], index: 0, kind: input, shape index: {}]
  %s1 = inlined_call_operand.vmem [shape: f32[5,32,224], index: 1, kind: input, shape index: {}]
  %s2 = inlined_call_operand.vmem [shape: f32[1,224], index: 2, kind: input, shape index: {}]
  %s3 = inlined_call_operand.vmem [shape: f32[14,27], index: 3, kind: input, shape index: {}]
  %s4 = inlined_call_operand.vmem [shape: f32[5,216,160], index: 4, kind: input, shape index: {}]
  %s5 = inlined_call_operand.vmem [shape: f32[1,160], index: 5, kind: input, shape index: {}]
  %s6 = inlined_call_operand.vmem [shape: f32[5,9], index: 6, kind: input, shape index: {}]
  %s7 = inlined_call_operand.vmem [shape: f32[5,144,128], index: 7, kind: input, shape index: {}]
  %s8 = inlined_call_operand.vmem [shape: f32[1,128], index: 8, kind: input, shape index: {}]
  %s9 = inlined_call_operand.vmem [shape: f32[128,128], index: 9, kind: input, shape index: {}]
  %s10 = inlined_call_operand.vmem [shape: f32[1,128], index: 10, kind: input, shape index: {}]
  %s11 = inlined_call_operand.vmem [shape: f32[128,128], index: 11, kind: input, shape index: {}]
  %s12 = inlined_call_operand.vmem [shape: f32[1,128], index: 12, kind: input, shape index: {}]
  %s13 = inlined_call_operand.vmem [shape: f32[8,8,128], index: 13, kind: output, shape index: {}]
  %s14 = sld [smem:[#allocation0]]
  $region85: #{lenet_forward.1} parent=0
    _
  %s16 = ssub.s32 1, %s14
  %s17 = scalar_select 0, %s16, %s14
  loop: start=0, step=1, limit=10
  $region2: #{lenet_forward.1} parent=0 // loop_pre_header
    _
  $region3: #{lenet_forward.1} parent=0 // loop_header
    %s19 = sphi 0, %s23
    %p20 = scmp.ge.s32.totalorder %s19, 10
    %s29 = sphi 0, %s31
    %s32 = sphi 0, %s29
    %s33 = sphi 0, %s32
    %s49 = sphi 0, %s33
    %s53 = sphi 0, %s53
    %s55 = sphi 0, %s53
    %s56 = sphi 0, %s55
    %s70 = sphi 0, %s56
    %s74 = sphi 0, %s74
    %s76 = sphi 0, %s74
    %s77 = sphi 0, %s76
    %s91 = sphi 0, %s77
    %s95 = sphi 0, %s95
    %s97 = sphi 0, %s95
    %s98 = sphi 0, %s97
    %s112 = sphi 0, %s98
    %s116 = sphi 0, %s116
    %s118 = sphi 0, %s116
    %s119 = sphi 0, %s118
    %s133 = sphi 0, %s119
    %s137 = sphi 0, %s137
    %s139 = sphi 0, %s137
    %s140 = sphi 0, %s139
    %s154 = sphi 0, %s140
    %s158 = sphi 0, %s158
    %s160 = sphi 0, %s158
    %s161 = sphi 0, %s160
    %s175 = sphi 0, %s161
    %s179 = sphi 0, %s179
    %s181 = sphi 0, %s179
    %s182 = sphi 0, %s181
    %s196 = sphi 0, %s182
    %s200 = sphi 0, %s200
    %s202 = sphi 0, %s200
    %s203 = sphi 0, %s202
    %s217 = sphi 0, %s203
    %s221 = sphi 0, %s221
    %s223 = sphi 0, %s221
    %s224 = sphi 0, %s223
    %s238 = sphi 0, %s224
    %s242 = sphi 0, %s242
    %s244 = sphi 0, %s242
    %s245 = sphi 0, %s244
    %s259 = sphi 0, %s245
    %s263 = sphi 0, %s263
    %s265 = sphi 0, %s263
    %s266 = sphi 0, %s265
    %s280 = sphi 0, %s266
    %s284 = sphi 0, %s284
    %s286 = sphi 0, %s284
    %s287 = sphi 0, %s286
    %s301 = sphi 0, %s287
    %s307 = sphi 0, %s309
    %s310 = sphi 0, %s307
    %s311 = sphi 0, %s310
    %s327 = sphi 0, %s311
  $region4: #{lenet_forward.1} parent=0 // loop_header_branch
    %22 = sbr.rel (%p20) target = $region8
  $region5: #{lenet_forward.1} parent=0 // loop_body
    %s24 = ssub.s32 %s19, 1
    %s25 = ssub.s32 %s19, 2
    %s26 = sadd.s32 %s19, 1
    %s27 = ssub.s32 %s19, %s26
    %p28 = scmp.eq.s32.totalorder %s27, 0
    %s30 = sadd.s32 %s29, 1
    %s31 = scalar_select %p28, %s29, %s30
    %p34 = pneg %p28
    %p35 = scmp.eq.s32.totalorder %s19, 7
    %p36 = por %p34, %p35
    %p37 = scmp.ne.s32.totalorder %s29, %s32
    %p38 = scmp.eq.s32.totalorder %s19, 0
    %p39 = por %p37, %p38
    %p40 = scmp.ne.s32.totalorder %s29, %s32
    %p41 = scmp.eq.s32.totalorder %s24, 7
    %p42 = por %p40, %p41
    %p43 = scmp.ne.s32.totalorder %s32, %s33
    %p44 = scmp.eq.s32.totalorder %s24, 0
    %p45 = por %p43, %p44
    %p46 = scmp.ne.s32.totalorder %s32, %s33
    %p47 = scmp.eq.s32.totalorder %s25, 7
    %p48 = por %p46, %p47
    %p50 = scmp.ne.s32.totalorder %s33, %s49
    %p51 = scmp.eq.s32.totalorder %s25, 0
    %p52 = por %p50, %p51
    %s54 = sadd.s32 %s53, 1
    %p57 = scmp.eq.s32.totalorder %s19, 7
    %p58 = scmp.ne.s32.totalorder %s53, %s55
    %p59 = scmp.eq.s32.totalorder %s19, 0
    %p60 = por %p58, %p59
    %p61 = scmp.ne.s32.totalorder %s53, %s55
    %p62 = scmp.eq.s32.totalorder %s24, 7
    %p63 = por %p61, %p62
    %p64 = scmp.ne.s32.totalorder %s55, %s56
    %p65 = scmp.eq.s32.totalorder %s24, 0
    %p66 = por %p64, %p65
    %p67 = scmp.ne.s32.totalorder %s55, %s56
    %p68 = scmp.eq.s32.totalorder %s25, 7
    %p69 = por %p67, %p68
    %p71 = scmp.ne.s32.totalorder %s56, %s70
    %p72 = scmp.eq.s32.totalorder %s25, 0
    %p73 = por %p71, %p72
    %s75 = sadd.s32 %s74, 1
    %p78 = scmp.eq.s32.totalorder %s19, 7
    %p79 = scmp.ne.s32.totalorder %s74, %s76
    %p80 = scmp.eq.s32.totalorder %s19, 0
    %p81 = por %p79, %p80
    %p82 = scmp.ne.s32.totalorder %s74, %s76
    %p83 = scmp.eq.s32.totalorder %s24, 7
    %p84 = por %p82, %p83
    %p85 = scmp.ne.s32.totalorder %s76, %s77
    %p86 = scmp.eq.s32.totalorder %s24, 0
    %p87 = por %p85, %p86
    %p88 = scmp.ne.s32.totalorder %s76, %s77
    %p89 = scmp.eq.s32.totalorder %s25, 7
    %p90 = por %p88, %p89
    %p92 = scmp.ne.s32.totalorder %s77, %s91
    %p93 = scmp.eq.s32.totalorder %s25, 0
    %p94 = por %p92, %p93
    %s96 = sadd.s32 %s95, 1
    %p99 = scmp.eq.s32.totalorder %s19, 7
    %p100 = scmp.ne.s32.totalorder %s95, %s97
    %p101 = scmp.eq.s32.totalorder %s19, 0
    %p102 = por %p100, %p101
    %p103 = scmp.ne.s32.totalorder %s95, %s97
    %p104 = scmp.eq.s32.totalorder %s24, 7
    %p105 = por %p103, %p104
    %p106 = scmp.ne.s32.totalorder %s97, %s98
    %p107 = scmp.eq.s32.totalorder %s24, 0
    %p108 = por %p106, %p107
    %p109 = scmp.ne.s32.totalorder %s97, %s98
    %p110 = scmp.eq.s32.totalorder %s25, 7
    %p111 = por %p109, %p110
    %p113 = scmp.ne.s32.totalorder %s98, %s112
    %p114 = scmp.eq.s32.totalorder %s25, 0
    %p115 = por %p113, %p114
    %s117 = sadd.s32 %s116, 1
    %p120 = scmp.eq.s32.totalorder %s19, 7
    %p121 = scmp.ne.s32.totalorder %s116, %s118
    %p122 = scmp.eq.s32.totalorder %s19, 0
    %p123 = por %p121, %p122
    %p124 = scmp.ne.s32.totalorder %s116, %s118
    %p125 = scmp.eq.s32.totalorder %s24, 7
    %p126 = por %p124, %p125
    %p127 = scmp.ne.s32.totalorder %s118, %s119
    %p128 = scmp.eq.s32.totalorder %s24, 0
    %p129 = por %p127, %p128
    %p130 = scmp.ne.s32.totalorder %s118, %s119
    %p131 = scmp.eq.s32.totalorder %s25, 7
    %p132 = por %p130, %p131
    %p134 = scmp.ne.s32.totalorder %s119, %s133
    %p135 = scmp.eq.s32.totalorder %s25, 0
    %p136 = por %p134, %p135
    %s138 = sadd.s32 %s137, 1
    %p141 = scmp.eq.s32.totalorder %s19, 7
    %p142 = scmp.ne.s32.totalorder %s137, %s139
    %p143 = scmp.eq.s32.totalorder %s19, 0
    %p144 = por %p142, %p143
    %p145 = scmp.ne.s32.totalorder %s137, %s139
    %p146 = scmp.eq.s32.totalorder %s24, 7
    %p147 = por %p145, %p146
    %p148 = scmp.ne.s32.totalorder %s139, %s140
    %p149 = scmp.eq.s32.totalorder %s24, 0
    %p150 = por %p148, %p149
    %p151 = scmp.ne.s32.totalorder %s139, %s140
    %p152 = scmp.eq.s32.totalorder %s25, 7
    %p153 = por %p151, %p152
    %p155 = scmp.ne.s32.totalorder %s140, %s154
    %p156 = scmp.eq.s32.totalorder %s25, 0
    %p157 = por %p155, %p156
    %s159 = sadd.s32 %s158, 1
    %p162 = scmp.eq.s32.totalorder %s19, 7
    %p163 = scmp.ne.s32.totalorder %s158, %s160
    %p164 = scmp.eq.s32.totalorder %s19, 0
    %p165 = por %p163, %p164
    %p166 = scmp.ne.s32.totalorder %s158, %s160
    %p167 = scmp.eq.s32.totalorder %s24, 7
    %p168 = por %p166, %p167
    %p169 = scmp.ne.s32.totalorder %s160, %s161
    %p170 = scmp.eq.s32.totalorder %s24, 0
    %p171 = por %p169, %p170
    %p172 = scmp.ne.s32.totalorder %s160, %s161
    %p173 = scmp.eq.s32.totalorder %s25, 7
    %p174 = por %p172, %p173
    %p176 = scmp.ne.s32.totalorder %s161, %s175
    %p177 = scmp.eq.s32.totalorder %s25, 0
    %p178 = por %p176, %p177
    %s180 = sadd.s32 %s179, 1
    %p183 = scmp.eq.s32.totalorder %s19, 7
    %p184 = scmp.ne.s32.totalorder %s179, %s181
    %p185 = scmp.eq.s32.totalorder %s19, 0
    %p186 = por %p184, %p185
    %p187 = scmp.ne.s32.totalorder %s179, %s181
    %p188 = scmp.eq.s32.totalorder %s24, 7
    %p189 = por %p187, %p188
    %p190 = scmp.ne.s32.totalorder %s181, %s182
    %p191 = scmp.eq.s32.totalorder %s24, 0
    %p192 = por %p190, %p191
    %p193 = scmp.ne.s32.totalorder %s181, %s182
    %p194 = scmp.eq.s32.totalorder %s25, 7
    %p195 = por %p193, %p194
    %p197 = scmp.ne.s32.totalorder %s182, %s196
    %p198 = scmp.eq.s32.totalorder %s25, 0
    %p199 = por %p197, %p198
    %s201 = sadd.s32 %s200, 1
    %p204 = scmp.eq.s32.totalorder %s19, 7
    %p205 = scmp.ne.s32.totalorder %s200, %s202
    %p206 = scmp.eq.s32.totalorder %s19, 0
    %p207 = por %p205, %p206
    %p208 = scmp.ne.s32.totalorder %s200, %s202
    %p209 = scmp.eq.s32.totalorder %s24, 7
    %p210 = por %p208, %p209
    %p211 = scmp.ne.s32.totalorder %s202, %s203
    %p212 = scmp.eq.s32.totalorder %s24, 0
    %p213 = por %p211, %p212
    %p214 = scmp.ne.s32.totalorder %s202, %s203
    %p215 = scmp.eq.s32.totalorder %s25, 7
    %p216 = por %p214, %p215
    %p218 = scmp.ne.s32.totalorder %s203, %s217
    %p219 = scmp.eq.s32.totalorder %s25, 0
    %p220 = por %p218, %p219
    %s222 = sadd.s32 %s221, 1
    %p225 = scmp.eq.s32.totalorder %s19, 7
    %p226 = scmp.ne.s32.totalorder %s221, %s223
    %p227 = scmp.eq.s32.totalorder %s19, 0
    %p228 = por %p226, %p227
    %p229 = scmp.ne.s32.totalorder %s221, %s223
    %p230 = scmp.eq.s32.totalorder %s24, 7
    %p231 = por %p229, %p230
    %p232 = scmp.ne.s32.totalorder %s223, %s224
    %p233 = scmp.eq.s32.totalorder %s24, 0
    %p234 = por %p232, %p233
    %p235 = scmp.ne.s32.totalorder %s223, %s224
    %p236 = scmp.eq.s32.totalorder %s25, 7
    %p237 = por %p235, %p236
    %p239 = scmp.ne.s32.totalorder %s224, %s238
    %p240 = scmp.eq.s32.totalorder %s25, 0
    %p241 = por %p239, %p240
    %s243 = sadd.s32 %s242, 1
    %p246 = scmp.eq.s32.totalorder %s19, 7
    %p247 = scmp.ne.s32.totalorder %s242, %s244
    %p248 = scmp.eq.s32.totalorder %s19, 0
    %p249 = por %p247, %p248
    %p250 = scmp.ne.s32.totalorder %s242, %s244
    %p251 = scmp.eq.s32.totalorder %s24, 7
    %p252 = por %p250, %p251
    %p253 = scmp.ne.s32.totalorder %s244, %s245
    %p254 = scmp.eq.s32.totalorder %s24, 0
    %p255 = por %p253, %p254
    %p256 = scmp.ne.s32.totalorder %s244, %s245
    %p257 = scmp.eq.s32.totalorder %s25, 7
    %p258 = por %p256, %p257
    %p260 = scmp.ne.s32.totalorder %s245, %s259
    %p261 = scmp.eq.s32.totalorder %s25, 0
    %p262 = por %p260, %p261
    %s264 = sadd.s32 %s263, 1
    %p267 = scmp.eq.s32.totalorder %s19, 7
    %p268 = scmp.ne.s32.totalorder %s263, %s265
    %p269 = scmp.eq.s32.totalorder %s19, 0
    %p270 = por %p268, %p269
    %p271 = scmp.ne.s32.totalorder %s263, %s265
    %p272 = scmp.eq.s32.totalorder %s24, 7
    %p273 = por %p271, %p272
    %p274 = scmp.ne.s32.totalorder %s265, %s266
    %p275 = scmp.eq.s32.totalorder %s24, 0
    %p276 = por %p274, %p275
    %p277 = scmp.ne.s32.totalorder %s265, %s266
    %p278 = scmp.eq.s32.totalorder %s25, 7
    %p279 = por %p277, %p278
    %p281 = scmp.ne.s32.totalorder %s266, %s280
    %p282 = scmp.eq.s32.totalorder %s25, 0
    %p283 = por %p281, %p282
    %s285 = sadd.s32 %s284, 1
    %p288 = scmp.eq.s32.totalorder %s19, 7
    %p289 = scmp.ne.s32.totalorder %s284, %s286
    %p290 = scmp.eq.s32.totalorder %s19, 0
    %p291 = por %p289, %p290
    %p292 = scmp.ne.s32.totalorder %s284, %s286
    %p293 = scmp.eq.s32.totalorder %s24, 7
    %p294 = por %p292, %p293
    %p295 = scmp.ne.s32.totalorder %s286, %s287
    %p296 = scmp.eq.s32.totalorder %s24, 0
    %p297 = por %p295, %p296
    %p298 = scmp.ne.s32.totalorder %s286, %s287
    %p299 = scmp.eq.s32.totalorder %s25, 7
    %p300 = por %p298, %p299
    %p302 = scmp.ne.s32.totalorder %s287, %s301
    %p303 = scmp.eq.s32.totalorder %s25, 0
    %p304 = por %p302, %p303
    %s305 = ssub.s32 %s19, %s26
    %p306 = scmp.eq.s32.totalorder %s305, 0
    %s308 = sadd.s32 %s307, 1
    %s309 = scalar_select %p306, %s307, %s308
    %p312 = pneg %p306
    %p313 = scmp.eq.s32.totalorder %s19, 7
    %p314 = por %p312, %p313
    %p315 = scmp.ne.s32.totalorder %s307, %s310
    %p316 = scmp.eq.s32.totalorder %s19, 0
    %p317 = por %p315, %p316
    %p318 = scmp.ne.s32.totalorder %s307, %s310
    %p319 = scmp.eq.s32.totalorder %s24, 7
    %p320 = por %p318, %p319
    %p321 = scmp.ne.s32.totalorder %s310, %s311
    %p322 = scmp.eq.s32.totalorder %s24, 0
    %p323 = por %p321, %p322
    %p324 = scmp.ne.s32.totalorder %s310, %s311
    %p325 = scmp.eq.s32.totalorder %s25, 7
    %p326 = por %p324, %p325
    %p328 = scmp.ne.s32.totalorder %s311, %s327
    %p329 = scmp.eq.s32.totalorder %s25, 0
    %p330 = por %p328, %p329
    %p331 = scmp.le.s32.totalorder 1, %s19
    %p332 = scmp.lt.s32.totalorder %s19, 9
    %p333 = pnand %p331, %p332
    %p334 = pneg %p333
    // Predicated region
    $region9: #{lenet_forward.1} parent=5 // pred_check
      _
    $region10: #{lenet_forward.1} parent=5 // pred_check_branch
      %336 = sbr.rel (%p333) target = $region12
    $region11: #{lenet_forward.1} parent=5 // pred_region
      %s337 = ssub.s32 %s19, 1
      // Predicated region
      $region13: #{lenet_forward.1} parent=11 // pred_check
        %p338 = pneg %p66
      $region14: #{lenet_forward.1} parent=11 // pred_check_branch
        %340 = sbr.rel (%p338) target = $region16
      $region15: #{lenet_forward.1} parent=11 // pred_region
        _
      $region16: #{lenet_forward.1} parent=11 // pred_fallthru
        _
      // Predicated region
      $region17: #{lenet_forward.1} parent=11 // pred_check
        %p341 = pneg %p87
      $region18: #{lenet_forward.1} parent=11 // pred_check_branch
        %343 = sbr.rel (%p341) target = $region20
      $region19: #{lenet_forward.1} parent=11 // pred_region
        _
      $region20: #{lenet_forward.1} parent=11 // pred_fallthru
        _
      // Predicated region
      $region21: #{lenet_forward.1} parent=11 // pred_check
        %p344 = pneg %p108
      $region22: #{lenet_forward.1} parent=11 // pred_check_branch
        %346 = sbr.rel (%p344) target = $region24
      $region23: #{lenet_forward.1} parent=11 // pred_region
        _
      $region24: #{lenet_forward.1} parent=11 // pred_fallthru
        _
      // Predicated region
      $region25: #{lenet_forward.1} parent=11 // pred_check
        %p347 = pneg %p129
      $region26: #{lenet_forward.1} parent=11 // pred_check_branch
        %349 = sbr.rel (%p347) target = $region28
      $region27: #{lenet_forward.1} parent=11 // pred_region
        _
      $region28: #{lenet_forward.1} parent=11 // pred_fallthru
        _
      // Predicated region
      $region29: #{lenet_forward.1} parent=11 // pred_check
        %p350 = pneg %p150
      $region30: #{lenet_forward.1} parent=11 // pred_check_branch
        %352 = sbr.rel (%p350) target = $region32
      $region31: #{lenet_forward.1} parent=11 // pred_region
        _
      $region32: #{lenet_forward.1} parent=11 // pred_fallthru
        _
      // Predicated region
      $region33: #{lenet_forward.1} parent=11 // pred_check
        %p353 = pneg %p171
      $region34: #{lenet_forward.1} parent=11 // pred_check_branch
        %355 = sbr.rel (%p353) target = $region36
      $region35: #{lenet_forward.1} parent=11 // pred_region
        _
      $region36: #{lenet_forward.1} parent=11 // pred_fallthru
        _
      // Predicated region
      $region37: #{lenet_forward.1} parent=11 // pred_check
        %p356 = pneg %p192
      $region38: #{lenet_forward.1} parent=11 // pred_check_branch
        %358 = sbr.rel (%p356) target = $region40
      $region39: #{lenet_forward.1} parent=11 // pred_region
        _
      $region40: #{lenet_forward.1} parent=11 // pred_fallthru
        _
      // Predicated region
      $region41: #{lenet_forward.1} parent=11 // pred_check
        %p359 = pneg %p213
      $region42: #{lenet_forward.1} parent=11 // pred_check_branch
        %361 = sbr.rel (%p359) target = $region44
      $region43: #{lenet_forward.1} parent=11 // pred_region
        _
      $region44: #{lenet_forward.1} parent=11 // pred_fallthru
        _
      // Predicated region
      $region45: #{lenet_forward.1} parent=11 // pred_check
        %p362 = pneg %p234
      $region46: #{lenet_forward.1} parent=11 // pred_check_branch
        %364 = sbr.rel (%p362) target = $region48
      $region47: #{lenet_forward.1} parent=11 // pred_region
        _
      $region48: #{lenet_forward.1} parent=11 // pred_fallthru
        _
      // Predicated region
      $region49: #{lenet_forward.1} parent=11 // pred_check
        %p365 = pneg %p255
      $region50: #{lenet_forward.1} parent=11 // pred_check_branch
        %367 = sbr.rel (%p365) target = $region52
      $region51: #{lenet_forward.1} parent=11 // pred_region
        _
      $region52: #{lenet_forward.1} parent=11 // pred_fallthru
        _
      // Predicated region
      $region53: #{lenet_forward.1} parent=11 // pred_check
        %p368 = pneg %p276
      $region54: #{lenet_forward.1} parent=11 // pred_check_branch
        %370 = sbr.rel (%p368) target = $region56
      $region55: #{lenet_forward.1} parent=11 // pred_region
        _
      $region56: #{lenet_forward.1} parent=11 // pred_fallthru
        _
      // Predicated region
      $region57: #{lenet_forward.1} parent=11 // pred_check
        %p371 = pneg %p297
      $region58: #{lenet_forward.1} parent=11 // pred_check_branch
        %373 = sbr.rel (%p371) target = $region60
      $region59: #{lenet_forward.1} parent=11 // pred_region
        _
      $region60: #{lenet_forward.1} parent=11 // pred_fallthru
        _
    $region12: #{lenet_forward.1} parent=5 // pred_fallthru
      _
    %p374 = scmp.lt.s32.totalorder %s19, 8
    // Predicated region
    $region61: #{lenet_forward.1} parent=5 // pred_check
      %p375 = pneg %p374
    $region62: #{lenet_forward.1} parent=5 // pred_check_branch
      %377 = sbr.rel (%p375) target = $region64
    $region63: #{lenet_forward.1} parent=5 // pred_region
      // Predicated region
      $region65: #{lenet_forward.1} parent=63 // pred_check
        %p378 = pneg %p39
      $region66: #{lenet_forward.1} parent=63 // pred_check_branch
        %380 = sbr.rel (%p378) target = $region68
      $region67: #{lenet_forward.1} parent=63 // pred_region
        %p381 = scmp.lt.s32.totalorder %s19, 7
        %s382 = scalar_select %p381, %s19, 7
        %s383 = smul.addr %s382, 4
        %s384 = smul.addr %s383, 8
        %s385 = scalar_lea.vmem %s0, %s384
      $region68: #{lenet_forward.1} parent=63 // pred_fallthru
        _
    $region64: #{lenet_forward.1} parent=5 // pred_fallthru
      _
    %p386 = scmp.le.s32.totalorder 1, %s19
    %p387 = scmp.lt.s32.totalorder %s19, 9
    %p388 = pnand %p386, %p387
    %p389 = pneg %p388
    // Predicated region
    $region69: #{lenet_forward.1} parent=5 // pred_check
      _
    $region70: #{lenet_forward.1} parent=5 // pred_check_branch
      %391 = sbr.rel (%p388) target = $region72
    $region71: #{lenet_forward.1} parent=5 // pred_region
      %s392 = ssub.s32 %s19, 1
      %p393 = scmp.lt.s32.totalorder %s24, 7
      %s394 = scalar_select %p393, %s24, 7
      %s395 = smul.addr %s394, 4
      %s396 = smul.addr %s395, 8
      %s397 = scalar_lea.vmem %s0, %s396
      %p398 = pneg %p45
      %p399 = pneg %p42
      %p400 = pneg %p66
      %p401 = pneg %p63
      %p402 = pneg %p87
      %p403 = pneg %p84
      %p404 = pneg %p108
      %p405 = pneg %p105
      %p406 = pneg %p129
      %p407 = pneg %p126
      %p408 = pneg %p150
      %p409 = pneg %p147
      %p410 = pneg %p171
      %p411 = pneg %p168
      %p412 = pneg %p192
      %p413 = pneg %p189
      %p414 = pneg %p213
      %p415 = pneg %p210
      %p416 = pneg %p234
      %p417 = pneg %p231
      %p418 = pneg %p255
      %p419 = pneg %p252
      %p420 = pneg %p276
      %p421 = pneg %p273
      %p422 = pneg %p297
      %p423 = pneg %p294
      %p424 = pneg %p323
      %p425 = pneg %p320
      %p426 = scmp.lt.s32.totalorder %s24, 7
      %s427 = scalar_select %p426, %s24, 7
      %s428 = smul.addr %s427, 8
      %s429 = scalar_lea.vmem %s13, %s428
      %p430 = scmp.lt.s32.totalorder %s24, 7
      %s431 = scalar_select %p430, %s24, 7
      %s432 = smul.addr %s431, 4
      %s433 = smul.addr %s432, 8
      %s434 = scalar_lea.vmem %s0, %s433
      %p435 = scmp.lt.s32.totalorder %s24, 7
      %s436 = scalar_select %p435, %s24, 7
      %s437 = smul.addr %s436, 8
      %s438 = scalar_lea.vmem %s13, %s437
      %v439 = vld [vmem:[%s434] sm:$0xff]
      %v440 = vld [vmem:[%s434 + $0x8] sm:$0xff]
      %v441 = vld [vmem:[%s434 + $0x10] sm:$0xff]
      %v442 = vld [vmem:[%s434 + $0x18] sm:$0xff]
      %v443 = vld [vmem:[%s1] sm:$0xff]
      %v444 = vld [vmem:[%s1 + $0x8] sm:$0xff]
      %v445 = vld [vmem:[%s1 + $0x10] sm:$0xff]
      %v446 = vld [vmem:[%s1 + $0x18] sm:$0xff]
      %v447 = vld [vmem:[%s1 + $0x20] sm:$0xff]
      %v448 = vld [vmem:[%s1 + $0x28] sm:$0xff]
      %v449 = vld [vmem:[%s1 + $0x30] sm:$0xff]
      %v450 = vld [vmem:[%s1 + $0x38] sm:$0xff]
      %vm451 = vcmask 261120
      %v453 = vsel %vm451, %v439, 0
      %v456 = vsel %vm451, %v440, 0
      %v459 = vsel %vm451, %v441, 0
      %v462 = vsel %vm451, %v442, 0
      %464 = vmatpush.msra.mxu0 0.0
      %465 = vmatpush.msra.mxu0 0.0
      %466 = vmatpush.msra.mxu0 0.0
      %467 = vmatpush.msra.mxu0 0.0
      %468 = vmatpush.msra.mxu0 0.0
      %469 = vmatpush.msra.mxu0 0.0
      %470 = vmatpush.msra.mxu0 0.0
      %471 = vmatpush.msra.mxu0 0.0
      %472 = vmatpush.msra.mxu0 0.0
      %473 = vmatpush.msra.mxu0 0.0
      %474 = vmatpush.msra.mxu0 0.0
      %475 = vmatpush.msra.mxu0 0.0
      %476 = vmatpush.msra.mxu0 %v449
      %477 = vmatpush.msra.mxu0 %v447
      %478 = vmatpush.msra.mxu0 %v445
      %479 = vmatpush.msra.mxu0 %v443
      %480 = vmatmul.f32.gmra.mxu0 %v453
      %v481 = vpop.f32.mrf.mxu0
      %v482 = vadd.f32 0.0, %v481
      %483 = vmatmul.f32.gmra.mxu0 %v456
      %v484 = vpop.f32.mrf.mxu0
      %v485 = vadd.f32 0.0, %v484
      %486 = vmatmul.f32.gmra.mxu0 %v459
      %v487 = vpop.f32.mrf.mxu0
      %v488 = vadd.f32 0.0, %v487
      %489 = vmatmul.f32.gmra.mxu0 %v462
      %v490 = vpop.f32.mrf.mxu0
      %v491 = vadd.f32 0.0, %v490
      %492 = vdwg.mxu0
      %493 = vmatpush.msra.mxu0 0.0
      %494 = vmatpush.msra.mxu0 0.0
      %495 = vmatpush.msra.mxu0 0.0
      %496 = vmatpush.msra.mxu0 0.0
      %497 = vmatpush.msra.mxu0 0.0
      %498 = vmatpush.msra.mxu0 0.0
      %499 = vmatpush.msra.mxu0 0.0
      %500 = vmatpush.msra.mxu0 0.0
      %501 = vmatpush.msra.mxu0 0.0
      %502 = vmatpush.msra.mxu0 0.0
      %503 = vmatpush.msra.mxu0 0.0
      %504 = vmatpush.msra.mxu0 0.0
      %505 = vmatpush.msra.mxu0 %v450
      %506 = vmatpush.msra.mxu0 %v448
      %507 = vmatpush.msra.mxu0 %v446
      %508 = vmatpush.msra.mxu0 %v444
      %509 = vmatmul.f32.gmra.mxu0 %v453
      %v510 = vpop.f32.mrf.mxu0
      %v511 = vadd.f32 0.0, %v510
      %512 = vmatmul.f32.gmra.mxu0 %v456
      %v513 = vpop.f32.mrf.mxu0
      %v514 = vadd.f32 0.0, %v513
      %515 = vmatmul.f32.gmra.mxu0 %v459
      %v516 = vpop.f32.mrf.mxu0
      %v517 = vadd.f32 0.0, %v516
      %518 = vmatmul.f32.gmra.mxu0 %v462
      %v519 = vpop.f32.mrf.mxu0
      %v520 = vadd.f32 0.0, %v519
      %521 = vdwg.mxu0
      %s522 = scalar_lea.vmem %s1, 64
      %v523 = vld [vmem:[%s522] sm:$0xff]
      %v524 = vld [vmem:[%s522 + $0x8] sm:$0xff]
      %v525 = vld [vmem:[%s522 + $0x10] sm:$0xff]
      %v526 = vld [vmem:[%s522 + $0x18] sm:$0xff]
      %v527 = vld [vmem:[%s522 + $0x20] sm:$0xff]
      %v528 = vld [vmem:[%s522 + $0x28] sm:$0xff]
      %v529 = vld [vmem:[%s522 + $0x30] sm:$0xff]
      %v530 = vld [vmem:[%s522 + $0x38] sm:$0xff]
      %531 = vmatpush.msra.mxu0 0.0
      %532 = vmatpush.msra.mxu0 0.0
      %533 = vmatpush.msra.mxu0 0.0
      %534 = vmatpush.msra.mxu0 0.0
      %535 = vmatpush.msra.mxu0 0.0
      %536 = vmatpush.msra.mxu0 0.0
      %537 = vmatpush.msra.mxu0 0.0
      %538 = vmatpush.msra.mxu0 0.0
      %539 = vmatpush.msra.mxu0 0.0
      %540 = vmatpush.msra.mxu0 0.0
      %541 = vmatpush.msra.mxu0 0.0
      %542 = vmatpush.msra.mxu0 0.0
      %543 = vmatpush.msra.mxu0 %v529
      %544 = vmatpush.msra.mxu0 %v527
      %545 = vmatpush.msra.mxu0 %v525
      %546 = vmatpush.msra.mxu0 %v523
      %547 = vmatmul.f32.gmra.mxu0 %v453
      %v548 = vpop.f32.mrf.mxu0
      %v549 = vadd.f32 0.0, %v548
      %550 = vmatmul.f32.gmra.mxu0 %v456
      %v551 = vpop.f32.mrf.mxu0
      %v552 = vadd.f32 0.0, %v551
      %553 = vmatmul.f32.gmra.mxu0 %v459
      %v554 = vpop.f32.mrf.mxu0
      %v555 = vadd.f32 0.0, %v554
      %556 = vmatmul.f32.gmra.mxu0 %v462
      %v557 = vpop.f32.mrf.mxu0
      %v558 = vadd.f32 0.0, %v557
      %559 = vdwg.mxu0
      %560 = vmatpush.msra.mxu0 0.0
      %561 = vmatpush.msra.mxu0 0.0
      %562 = vmatpush.msra.mxu0 0.0
      %563 = vmatpush.msra.mxu0 0.0
      %564 = vmatpush.msra.mxu0 0.0
      %565 = vmatpush.msra.mxu0 0.0
      %566 = vmatpush.msra.mxu0 0.0
      %567 = vmatpush.msra.mxu0 0.0
      %568 = vmatpush.msra.mxu0 0.0
      %569 = vmatpush.msra.mxu0 0.0
      %570 = vmatpush.msra.mxu0 0.0
      %571 = vmatpush.msra.mxu0 0.0
      %572 = vmatpush.msra.mxu0 %v530
      %573 = vmatpush.msra.mxu0 %v528
      %574 = vmatpush.msra.mxu0 %v526
      %575 = vmatpush.msra.mxu0 %v524
      %576 = vmatmul.f32.gmra.mxu0 %v453
      %v577 = vpop.f32.mrf.mxu0
      %v578 = vadd.f32 0.0, %v577
      %579 = vmatmul.f32.gmra.mxu0 %v456
      %v580 = vpop.f32.mrf.mxu0
      %v581 = vadd.f32 0.0, %v580
      %582 = vmatmul.f32.gmra.mxu0 %v459
      %v583 = vpop.f32.mrf.mxu0
      %v584 = vadd.f32 0.0, %v583
      %585 = vmatmul.f32.gmra.mxu0 %v462
      %v586 = vpop.f32.mrf.mxu0
      %v587 = vadd.f32 0.0, %v586
      %588 = vdwg.mxu0
      %vm597 = vcmask 1046528
      %v598 = vrot.slane %v549, 1
      %v599 = vrot.slane %v552, 1
      %v600 = vsel %vm597, %v598, %v599
      %v601 = vrot.slane %v578, 1
      %v602 = vrot.slane %v581, 1
      %v603 = vsel %vm597, %v601, %v602
      %v604 = vrot.slane %v555, 1
      %v605 = vsel %vm597, %v599, %v604
      %v606 = vrot.slane %v584, 1
      %v607 = vsel %vm597, %v602, %v606
      %v608 = vrot.slane %v558, 1
      %v609 = vsel %vm597, %v604, %v608
      %v610 = vrot.slane %v587, 1
      %v611 = vsel %vm597, %v606, %v610
      %v620 = vadd.f32 %v482, %v600
      %v621 = vadd.f32 %v511, %v603
      %v622 = vadd.f32 %v485, %v605
      %v623 = vadd.f32 %v514, %v607
      %v624 = vadd.f32 %v488, %v609
      %v625 = vadd.f32 %v517, %v611
      %v626 = vadd.f32 %v491, %v608
      %v627 = vadd.f32 %v520, %v610
      %s628 = scalar_lea.vmem %s1, 128
      %v629 = vld [vmem:[%s628] sm:$0xff]
      %v630 = vld [vmem:[%s628 + $0x8] sm:$0xff]
      %v631 = vld [vmem:[%s628 + $0x10] sm:$0xff]
      %v632 = vld [vmem:[%s628 + $0x18] sm:$0xff]
      %v633 = vld [vmem:[%s628 + $0x20] sm:$0xff]
      %v634 = vld [vmem:[%s628 + $0x28] sm:$0xff]
      %v635 = vld [vmem:[%s628 + $0x30] sm:$0xff]
      %v636 = vld [vmem:[%s628 + $0x38] sm:$0xff]
      %637 = vmatpush.msra.mxu0 0.0
      %638 = vmatpush.msra.mxu0 0.0
      %639 = vmatpush.msra.mxu0 0.0
      %640 = vmatpush.msra.mxu0 0.0
      %641 = vmatpush.msra.mxu0 0.0
      %642 = vmatpush.msra.mxu0 0.0
      %643 = vmatpush.msra.mxu0 0.0
      %644 = vmatpush.msra.mxu0 0.0
      %645 = vmatpush.msra.mxu0 0.0
      %646 = vmatpush.msra.mxu0 0.0
      %647 = vmatpush.msra.mxu0 0.0
      %648 = vmatpush.msra.mxu0 0.0
      %649 = vmatpush.msra.mxu0 %v635
      %650 = vmatpush.msra.mxu0 %v633
      %651 = vmatpush.msra.mxu0 %v631
      %652 = vmatpush.msra.mxu0 %v629
      %653 = vmatmul.f32.gmra.mxu0 %v453
      %v654 = vpop.f32.mrf.mxu0
      %v655 = vadd.f32 0.0, %v654
      %656 = vmatmul.f32.gmra.mxu0 %v456
      %v657 = vpop.f32.mrf.mxu0
      %v658 = vadd.f32 0.0, %v657
      %659 = vmatmul.f32.gmra.mxu0 %v459
      %v660 = vpop.f32.mrf.mxu0
      %v661 = vadd.f32 0.0, %v660
      %662 = vmatmul.f32.gmra.mxu0 %v462
      %v663 = vpop.f32.mrf.mxu0
      %v664 = vadd.f32 0.0, %v663
      %665 = vdwg.mxu0
      %666 = vmatpush.msra.mxu0 0.0
      %667 = vmatpush.msra.mxu0 0.0
      %668 = vmatpush.msra.mxu0 0.0
      %669 = vmatpush.msra.mxu0 0.0
      %670 = vmatpush.msra.mxu0 0.0
      %671 = vmatpush.msra.mxu0 0.0
      %672 = vmatpush.msra.mxu0 0.0
      %673 = vmatpush.msra.mxu0 0.0
      %674 = vmatpush.msra.mxu0 0.0
      %675 = vmatpush.msra.mxu0 0.0
      %676 = vmatpush.msra.mxu0 0.0
      %677 = vmatpush.msra.mxu0 0.0
      %678 = vmatpush.msra.mxu0 %v636
      %679 = vmatpush.msra.mxu0 %v634
      %680 = vmatpush.msra.mxu0 %v632
      %681 = vmatpush.msra.mxu0 %v630
      %682 = vmatmul.f32.gmra.mxu0 %v453
      %v683 = vpop.f32.mrf.mxu0
      %v684 = vadd.f32 0.0, %v683
      %685 = vmatmul.f32.gmra.mxu0 %v456
      %v686 = vpop.f32.mrf.mxu0
      %v687 = vadd.f32 0.0, %v686
      %688 = vmatmul.f32.gmra.mxu0 %v459
      %v689 = vpop.f32.mrf.mxu0
      %v690 = vadd.f32 0.0, %v689
      %691 = vmatmul.f32.gmra.mxu0 %v462
      %v692 = vpop.f32.mrf.mxu0
      %v693 = vadd.f32 0.0, %v692
      %694 = vdwg.mxu0
      %vm703 = vcmask 1045504
      %v704 = vrot.slane %v655, 2
      %v705 = vrot.slane %v658, 2
      %v706 = vsel %vm703, %v704, %v705
      %v707 = vrot.slane %v684, 2
      %v708 = vrot.slane %v687, 2
      %v709 = vsel %vm703, %v707, %v708
      %v710 = vrot.slane %v661, 2
      %v711 = vsel %vm703, %v705, %v710
      %v712 = vrot.slane %v690, 2
      %v713 = vsel %vm703, %v708, %v712
      %v714 = vrot.slane %v664, 2
      %v715 = vsel %vm703, %v710, %v714
      %v716 = vrot.slane %v693, 2
      %v717 = vsel %vm703, %v712, %v716
      %v726 = vadd.f32 %v620, %v706
      %v727 = vadd.f32 %v621, %v709
      %v728 = vadd.f32 %v622, %v711
      %v729 = vadd.f32 %v623, %v713
      %v730 = vadd.f32 %v624, %v715
      %v731 = vadd.f32 %v625, %v717
      %v732 = vadd.f32 %v626, %v714
      %v733 = vadd.f32 %v627, %v716
      %s734 = scalar_lea.vmem %s1, 192
      %v735 = vld [vmem:[%s734] sm:$0xff]
      %v736 = vld [vmem:[%s734 + $0x8] sm:$0xff]
      %v737 = vld [vmem:[%s734 + $0x10] sm:$0xff]
      %v738 = vld [vmem:[%s734 + $0x18] sm:$0xff]
      %v739 = vld [vmem:[%s734 + $0x20] sm:$0xff]
      %v740 = vld [vmem:[%s734 + $0x28] sm:$0xff]
      %v741 = vld [vmem:[%s734 + $0x30] sm:$0xff]
      %v742 = vld [vmem:[%s734 + $0x38] sm:$0xff]
      %743 = vmatpush.msra.mxu0 0.0
      %744 = vmatpush.msra.mxu0 0.0
      %745 = vmatpush.msra.mxu0 0.0
      %746 = vmatpush.msra.mxu0 0.0
      %747 = vmatpush.msra.mxu0 0.0
      %748 = vmatpush.msra.mxu0 0.0
      %749 = vmatpush.msra.mxu0 0.0
      %750 = vmatpush.msra.mxu0 0.0
      %751 = vmatpush.msra.mxu0 0.0
      %752 = vmatpush.msra.mxu0 0.0
      %753 = vmatpush.msra.mxu0 0.0
      %754 = vmatpush.msra.mxu0 0.0
      %755 = vmatpush.msra.mxu0 %v741
      %756 = vmatpush.msra.mxu0 %v739
      %757 = vmatpush.msra.mxu0 %v737
      %758 = vmatpush.msra.mxu0 %v735
      %759 = vmatmul.f32.gmra.mxu0 %v453
      %v760 = vpop.f32.mrf.mxu0
      %v761 = vadd.f32 0.0, %v760
      %762 = vmatmul.f32.gmra.mxu0 %v456
      %v763 = vpop.f32.mrf.mxu0
      %v764 = vadd.f32 0.0, %v763
      %765 = vmatmul.f32.gmra.mxu0 %v459
      %v766 = vpop.f32.mrf.mxu0
      %v767 = vadd.f32 0.0, %v766
      %768 = vmatmul.f32.gmra.mxu0 %v462
      %v769 = vpop.f32.mrf.mxu0
      %v770 = vadd.f32 0.0, %v769
      %771 = vdwg.mxu0
      %772 = vmatpush.msra.mxu0 0.0
      %773 = vmatpush.msra.mxu0 0.0
      %774 = vmatpush.msra.mxu0 0.0
      %775 = vmatpush.msra.mxu0 0.0
      %776 = vmatpush.msra.mxu0 0.0
      %777 = vmatpush.msra.mxu0 0.0
      %778 = vmatpush.msra.mxu0 0.0
      %779 = vmatpush.msra.mxu0 0.0
      %780 = vmatpush.msra.mxu0 0.0
      %781 = vmatpush.msra.mxu0 0.0
      %782 = vmatpush.msra.mxu0 0.0
      %783 = vmatpush.msra.mxu0 0.0
      %784 = vmatpush.msra.mxu0 %v742
      %785 = vmatpush.msra.mxu0 %v740
      %786 = vmatpush.msra.mxu0 %v738
      %787 = vmatpush.msra.mxu0 %v736
      %788 = vmatmul.f32.gmra.mxu0 %v453
      %v789 = vpop.f32.mrf.mxu0
      %v790 = vadd.f32 0.0, %v789
      %791 = vmatmul.f32.gmra.mxu0 %v456
      %v792 = vpop.f32.mrf.mxu0
      %v793 = vadd.f32 0.0, %v792
      %794 = vmatmul.f32.gmra.mxu0 %v459
      %v795 = vpop.f32.mrf.mxu0
      %v796 = vadd.f32 0.0, %v795
      %797 = vmatmul.f32.gmra.mxu0 %v462
      %v798 = vpop.f32.mrf.mxu0
      %v799 = vadd.f32 0.0, %v798
      %800 = vdwg.mxu0
      %vm809 = vcmask 1044480
      %v810 = vrot.slane %v761, 3
      %v811 = vrot.slane %v764, 3
      %v812 = vsel %vm809, %v810, %v811
      %v813 = vrot.slane %v790, 3
      %v814 = vrot.slane %v793, 3
      %v815 = vsel %vm809, %v813, %v814
      %v816 = vrot.slane %v767, 3
      %v817 = vsel %vm809, %v811, %v816
      %v818 = vrot.slane %v796, 3
      %v819 = vsel %vm809, %v814, %v818
      %v820 = vrot.slane %v770, 3
      %v821 = vsel %vm809, %v816, %v820
      %v822 = vrot.slane %v799, 3
      %v823 = vsel %vm809, %v818, %v822
      %v832 = vadd.f32 %v726, %v812
      %v833 = vadd.f32 %v727, %v815
      %v834 = vadd.f32 %v728, %v817
      %v835 = vadd.f32 %v729, %v819
      %v836 = vadd.f32 %v730, %v821
      %v837 = vadd.f32 %v731, %v823
      %v838 = vadd.f32 %v732, %v820
      %v839 = vadd.f32 %v733, %v822
      %s840 = scalar_lea.vmem %s1, 256
      %v841 = vld [vmem:[%s840] sm:$0xff]
      %v842 = vld [vmem:[%s840 + $0x8] sm:$0xff]
      %v843 = vld [vmem:[%s840 + $0x10] sm:$0xff]
      %v844 = vld [vmem:[%s840 + $0x18] sm:$0xff]
      %v845 = vld [vmem:[%s840 + $0x20] sm:$0xff]
      %v846 = vld [vmem:[%s840 + $0x28] sm:$0xff]
      %v847 = vld [vmem:[%s840 + $0x30] sm:$0xff]
      %v848 = vld [vmem:[%s840 + $0x38] sm:$0xff]
      %849 = vmatpush.msra.mxu0 0.0
      %850 = vmatpush.msra.mxu0 0.0
      %851 = vmatpush.msra.mxu0 0.0
      %852 = vmatpush.msra.mxu0 0.0
      %853 = vmatpush.msra.mxu0 0.0
      %854 = vmatpush.msra.mxu0 0.0
      %855 = vmatpush.msra.mxu0 0.0
      %856 = vmatpush.msra.mxu0 0.0
      %857 = vmatpush.msra.mxu0 0.0
      %858 = vmatpush.msra.mxu0 0.0
      %859 = vmatpush.msra.mxu0 0.0
      %860 = vmatpush.msra.mxu0 0.0
      %861 = vmatpush.msra.mxu0 %v847
      %862 = vmatpush.msra.mxu0 %v845
      %863 = vmatpush.msra.mxu0 %v843
      %864 = vmatpush.msra.mxu0 %v841
      %865 = vmatmul.f32.gmra.mxu0 %v453
      %v866 = vpop.f32.mrf.mxu0
      %v867 = vadd.f32 0.0, %v866
      %868 = vmatmul.f32.gmra.mxu0 %v456
      %v869 = vpop.f32.mrf.mxu0
      %v870 = vadd.f32 0.0, %v869
      %871 = vmatmul.f32.gmra.mxu0 %v459
      %v872 = vpop.f32.mrf.mxu0
      %v873 = vadd.f32 0.0, %v872
      %874 = vmatmul.f32.gmra.mxu0 %v462
      %v875 = vpop.f32.mrf.mxu0
      %v876 = vadd.f32 0.0, %v875
      %877 = vdwg.mxu0
      %878 = vmatpush.msra.mxu0 0.0
      %879 = vmatpush.msra.mxu0 0.0
      %880 = vmatpush.msra.mxu0 0.0
      %881 = vmatpush.msra.mxu0 0.0
      %882 = vmatpush.msra.mxu0 0.0
      %883 = vmatpush.msra.mxu0 0.0
      %884 = vmatpush.msra.mxu0 0.0
      %885 = vmatpush.msra.mxu0 0.0
      %886 = vmatpush.msra.mxu0 0.0
      %887 = vmatpush.msra.mxu0 0.0
      %888 = vmatpush.msra.mxu0 0.0
      %889 = vmatpush.msra.mxu0 0.0
      %890 = vmatpush.msra.mxu0 %v848
      %891 = vmatpush.msra.mxu0 %v846
      %892 = vmatpush.msra.mxu0 %v844
      %893 = vmatpush.msra.mxu0 %v842
      %894 = vmatmul.f32.gmra.mxu0 %v453
      %v895 = vpop.f32.mrf.mxu0
      %v896 = vadd.f32 0.0, %v895
      %897 = vmatmul.f32.gmra.mxu0 %v456
      %v898 = vpop.f32.mrf.mxu0
      %v899 = vadd.f32 0.0, %v898
      %900 = vmatmul.f32.gmra.mxu0 %v459
      %v901 = vpop.f32.mrf.mxu0
      %v902 = vadd.f32 0.0, %v901
      %903 = vmatmul.f32.gmra.mxu0 %v462
      %v904 = vpop.f32.mrf.mxu0
      %v905 = vadd.f32 0.0, %v904
      %906 = vdwg.mxu0
      %vm915 = vcmask 1043456
      %v916 = vrot.slane %v867, 4
      %v917 = vrot.slane %v870, 4
      %v918 = vsel %vm915, %v916, %v917
      %v919 = vrot.slane %v896, 4
      %v920 = vrot.slane %v899, 4
      %v921 = vsel %vm915, %v919, %v920
      %v922 = vrot.slane %v873, 4
      %v923 = vsel %vm915, %v917, %v922
      %v924 = vrot.slane %v902, 4
      %v925 = vsel %vm915, %v920, %v924
      %v926 = vrot.slane %v876, 4
      %v927 = vsel %vm915, %v922, %v926
      %v928 = vrot.slane %v905, 4
      %v929 = vsel %vm915, %v924, %v928
      %v938 = vadd.f32 %v832, %v918
      %v939 = vadd.f32 %v833, %v921
      %v940 = vadd.f32 %v834, %v923
      %v941 = vadd.f32 %v835, %v925
      %v942 = vadd.f32 %v836, %v927
      %v943 = vadd.f32 %v837, %v929
      %v944 = vadd.f32 %v838, %v926
      %v945 = vadd.f32 %v839, %v928
      %v946 = vld [vmem:[%s2] sm:$0x3]
      %v948 = vperm.slane %v946, 0
      %v949 = vperm.slane %v946, 1
      %v952 = vadd.f32 %v938, %v948
      %v953 = vadd.f32 %v939, %v949
      %v954 = vadd.f32 %v940, %v948
      %v955 = vadd.f32 %v941, %v949
      %v956 = vadd.f32 %v942, %v948
      %v957 = vadd.f32 %v943, %v949
      %v958 = vadd.f32 %v944, %v948
      %v959 = vadd.f32 %v945, %v949
      %v960 = vmax.f32 %v952, 0.0
      %v961 = vmax.f32 %v953, 0.0
      %v962 = vmax.f32 %v954, 0.0
      %v963 = vmax.f32 %v955, 0.0
      %v964 = vmax.f32 %v956, 0.0
      %v965 = vmax.f32 %v957, 0.0
      %v966 = vmax.f32 %v958, 0.0
      %v967 = vmax.f32 %v959, 0.0
      %976 = vrot.lane.b32.xlu0 %v960, 120
      %v977 = vpop.permute.xlu0 %976
      %978 = vrot.lane.b32.xlu0 %v961, 120
      %v979 = vpop.permute.xlu0 %978
      %980 = vrot.lane.b32.xlu0 %v962, 120
      %v981 = vpop.permute.xlu0 %980
      %982 = vrot.lane.b32.xlu0 %v963, 120
      %v983 = vpop.permute.xlu0 %982
      %984 = vrot.lane.b32.xlu0 %v964, 120
      %v985 = vpop.permute.xlu0 %984
      %986 = vrot.lane.b32.xlu0 %v965, 120
      %v987 = vpop.permute.xlu0 %986
      %988 = vrot.lane.b32.xlu0 %v966, 120
      %v989 = vpop.permute.xlu0 %988
      %990 = vrot.lane.b32.xlu0 %v967, 120
      %v991 = vpop.permute.xlu0 %990
      %vm992 = vcmask 982016
      %v993 = vsel %vm992, %v977, %v979
      %v994 = vsel %vm992, %v981, %v983
      %v995 = vsel %vm992, %v985, %v987
      %v996 = vsel %vm992, %v989, %v991
      %v1005 = vmax.f32 %v960, %v993
      %v1006 = vmax.f32 %v961, %v979
      %v1007 = vmax.f32 %v962, %v994
      %v1008 = vmax.f32 %v963, %v983
      %v1009 = vmax.f32 %v964, %v995
      %v1010 = vmax.f32 %v965, %v987
      %v1011 = vmax.f32 %v966, %v996
      %v1012 = vmax.f32 %v967, %v991
      %v1021 = vrot.slane %v1005, 1
      %v1022 = vrot.slane %v1007, 1
      %v1023 = vsel %vm597, %v1021, %v1022
      %v1024 = vrot.slane %v1006, 1
      %v1025 = vrot.slane %v1008, 1
      %v1026 = vsel %vm597, %v1024, %v1025
      %v1027 = vrot.slane %v1009, 1
      %v1028 = vsel %vm597, %v1022, %v1027
      %v1029 = vrot.slane %v1010, 1
      %v1030 = vsel %vm597, %v1025, %v1029
      %v1031 = vrot.slane %v1011, 1
      %v1032 = vsel %vm597, %v1027, %v1031
      %v1033 = vrot.slane %v1012, 1
      %v1034 = vsel %vm597, %v1029, %v1033
      %v1043 = vmax.f32 %v1005, %v1023
      %v1044 = vmax.f32 %v1006, %v1026
      %v1045 = vmax.f32 %v1007, %v1028
      %v1046 = vmax.f32 %v1008, %v1030
      %v1047 = vmax.f32 %v1009, %v1032
      %v1048 = vmax.f32 %v1010, %v1034
      %v1049 = vmax.f32 %v1011, %v1031
      %v1050 = vmax.f32 %v1012, %v1033
      %v1051 = vld [vmem:[%s3] sm:$0xff]
      %v1052 = vld [vmem:[%s3 + $0x8] sm:$0x3f]
      %vm1053 = vcmask 220160
      %v1055 = vsel %vm1053, %v1051, 0
      %v1058 = vsel %vm1053, %v1052, 0
      %vm1060 = vcmask 1042432
      %v1062 = vsel %vm1060, %v1049, 0
      %v1065 = vsel %vm1060, %v1050, 0
      %1067 = vmatpush.msra.mxu0 0.0
      %1068 = vmatpush.msra.mxu0 0.0
      %1069 = vmatpush.msra.mxu0 0.0
      %1070 = vmatpush.msra.mxu0 0.0
      %1071 = vmatpush.msra.mxu0 0.0
      %1072 = vmatpush.msra.mxu0 0.0
      %1073 = vmatpush.msra.mxu0 0.0
      %1074 = vmatpush.msra.mxu0 0.0
      %1075 = vmatpush.msra.mxu0 0.0
      %1076 = vmatpush.msra.mxu0 0.0
      %1077 = vmatpush.msra.mxu0 0.0
      %1078 = vmatpush.msra.mxu0 0.0
      %1079 = vmatpush.msra.mxu0 %v1062
      %1080 = vmatpush.msra.mxu0 %v1047
      %1081 = vmatpush.msra.mxu0 %v1045
      %1082 = vmatpush.msra.mxu0 %v1043
      %1083 = vmatmul.f32.gmra.mxu0 %v1055
      %v1084 = vpop.f32.mrf.mxu0
      %v1085 = vadd.f32 0.0, %v1084
      %1086 = vmatmul.f32.gmra.mxu0 %v1058
      %v1087 = vpop.f32.mrf.mxu0
      %v1088 = vadd.f32 0.0, %v1087
      %1089 = vdwg.mxu0
      %1090 = vmatpush.msra.mxu0 0.0
      %1091 = vmatpush.msra.mxu0 0.0
      %1092 = vmatpush.msra.mxu0 0.0
      %1093 = vmatpush.msra.mxu0 0.0
      %1094 = vmatpush.msra.mxu0 0.0
      %1095 = vmatpush.msra.mxu0 0.0
      %1096 = vmatpush.msra.mxu0 0.0
      %1097 = vmatpush.msra.mxu0 0.0
      %1098 = vmatpush.msra.mxu0 0.0
      %1099 = vmatpush.msra.mxu0 0.0
      %1100 = vmatpush.msra.mxu0 0.0
      %1101 = vmatpush.msra.mxu0 0.0
      %1102 = vmatpush.msra.mxu0 %v1065
      %1103 = vmatpush.msra.mxu0 %v1048
      %1104 = vmatpush.msra.mxu0 %v1046
      %1105 = vmatpush.msra.mxu0 %v1044
      %1106 = vmatmul.f32.gmra.mxu0 %v1055
      %v1107 = vpop.f32.mrf.mxu0
      %v1108 = vadd.f32 0.0, %v1107
      %1109 = vmatmul.f32.gmra.mxu0 %v1058
      %v1110 = vpop.f32.mrf.mxu0
      %v1111 = vadd.f32 0.0, %v1110
      %1112 = vdwg.mxu0
      %v1113 = vld [vmem:[%s4] sm:$0xff]
      %v1114 = vld [vmem:[%s4 + $0x8] sm:$0xff]
      %v1115 = vld [vmem:[%s4 + $0x10] sm:$0xff]
      %v1116 = vld [vmem:[%s4 + $0x18] sm:$0xff]
      %v1117 = vld [vmem:[%s4 + $0x20] sm:$0xff]
      %v1118 = vld [vmem:[%s4 + $0x28] sm:$0xff]
      %v1119 = vld [vmem:[%s4 + $0x30] sm:$0xff]
      %v1120 = vld [vmem:[%s4 + $0x38] sm:$0xff]
      %v1121 = vld [vmem:[%s4 + $0x40] sm:$0xff]
      %v1122 = vld [vmem:[%s4 + $0x48] sm:$0xff]
      %v1123 = vld [vmem:[%s4 + $0x50] sm:$0xff]
      %v1124 = vld [vmem:[%s4 + $0x58] sm:$0xff]
      %v1125 = vld [vmem:[%s4 + $0x60] sm:$0xff]
      %v1126 = vld [vmem:[%s4 + $0x68] sm:$0xff]
      %v1127 = vld [vmem:[%s4 + $0x70] sm:$0xff]
      %v1128 = vld [vmem:[%s4 + $0x78] sm:$0xff]
      %v1129 = vld [vmem:[%s4 + $0x80] sm:$0xff]
      %v1130 = vld [vmem:[%s4 + $0x88] sm:$0xff]
      %v1131 = vld [vmem:[%s4 + $0x90] sm:$0xff]
      %v1132 = vld [vmem:[%s4 + $0x98] sm:$0xff]
      %v1133 = vld [vmem:[%s4 + $0xa0] sm:$0xff]
      %v1134 = vld [vmem:[%s4 + $0xa8] sm:$0xff]
      %v1135 = vld [vmem:[%s4 + $0xb0] sm:$0xff]
      %v1136 = vld [vmem:[%s4 + $0xb8] sm:$0xff]
      %v1137 = vld [vmem:[%s4 + $0xc0] sm:$0xff]
      %v1138 = vld [vmem:[%s4 + $0xc8] sm:$0xff]
      %v1139 = vld [vmem:[%s4 + $0xd0] sm:$0xff]
      %v1140 = vld [vmem:[%s4 + $0xd8] sm:$0xff]
      %v1141 = vld [vmem:[%s4 + $0xe0] sm:$0xff]
      %v1142 = vld [vmem:[%s4 + $0xe8] sm:$0xff]
      %v1143 = vld [vmem:[%s4 + $0xf0] sm:$0xff]
      %v1144 = vld [vmem:[%s4 + $0xf8] sm:$0xff]
      %v1145 = vld [vmem:[%s4 + $0x100] sm:$0xff]
      %v1146 = vld [vmem:[%s4 + $0x108] sm:$0xff]
      %v1147 = vld [vmem:[%s4 + $0x110] sm:$0xff]
      %v1148 = vld [vmem:[%s4 + $0x118] sm:$0xff]
      %v1149 = vld [vmem:[%s4 + $0x120] sm:$0xff]
      %v1150 = vld [vmem:[%s4 + $0x128] sm:$0xff]
      %v1151 = vld [vmem:[%s4 + $0x130] sm:$0xff]
      %v1152 = vld [vmem:[%s4 + $0x138] sm:$0xff]
      %v1153 = vld [vmem:[%s4 + $0x140] sm:$0xff]
      %v1154 = vld [vmem:[%s4 + $0x148] sm:$0xff]
      %v1155 = vld [vmem:[%s4 + $0x150] sm:$0xff]
      %v1156 = vld [vmem:[%s4 + $0x158] sm:$0xff]
      %v1157 = vld [vmem:[%s4 + $0x160] sm:$0xff]
      %v1158 = vld [vmem:[%s4 + $0x168] sm:$0xff]
      %v1159 = vld [vmem:[%s4 + $0x170] sm:$0xff]
      %v1160 = vld [vmem:[%s4 + $0x178] sm:$0xff]
      %v1161 = vld [vmem:[%s4 + $0x180] sm:$0xff]
      %v1162 = vld [vmem:[%s4 + $0x188] sm:$0xff]
      %v1163 = vld [vmem:[%s4 + $0x190] sm:$0xff]
      %v1164 = vld [vmem:[%s4 + $0x198] sm:$0xff]
      %v1165 = vld [vmem:[%s4 + $0x1a0] sm:$0xff]
      %v1166 = vld [vmem:[%s4 + $0x1a8] sm:$0xff]
      %vm1167 = vcmask 719872
      %v1169 = vsel %vm1167, %v1108, 0
      %v1172 = vsel %vm1167, %v1111, 0
      %1174 = vmatpush.msra.mxu0 %v1143
      %1175 = vmatpush.msra.mxu0 %v1141
      %1176 = vmatpush.msra.mxu0 %v1139
      %1177 = vmatpush.msra.mxu0 %v1137
      %1178 = vmatpush.msra.mxu0 %v1135
      %1179 = vmatpush.msra.mxu0 %v1133
      %1180 = vmatpush.msra.mxu0 %v1131
      %1181 = vmatpush.msra.mxu0 %v1129
      %1182 = vmatpush.msra.mxu0 %v1127
      %1183 = vmatpush.msra.mxu0 %v1125
      %1184 = vmatpush.msra.mxu0 %v1123
      %1185 = vmatpush.msra.mxu0 %v1121
      %1186 = vmatpush.msra.mxu0 %v1119
      %1187 = vmatpush.msra.mxu0 %v1117
      %1188 = vmatpush.msra.mxu0 %v1115
      %1189 = vmatpush.msra.mxu0 %v1113
      %1190 = vmatmul.f32.gmra.mxu0 %v1085
      %v1191 = vpop.f32.mrf.mxu0
      %v1192 = vadd.f32 0.0, %v1191
      %1193 = vmatmul.f32.gmra.mxu0 %v1088
      %v1194 = vpop.f32.mrf.mxu0
      %v1195 = vadd.f32 0.0, %v1194
      %1196 = vdwg.mxu0
      %1197 = vmatpush.msra.mxu0 0.0
      %1198 = vmatpush.msra.mxu0 0.0
      %1199 = vmatpush.msra.mxu0 0.0
      %1200 = vmatpush.msra.mxu0 0.0
      %1201 = vmatpush.msra.mxu0 0.0
      %1202 = vmatpush.msra.mxu0 %v1165
      %1203 = vmatpush.msra.mxu0 %v1163
      %1204 = vmatpush.msra.mxu0 %v1161
      %1205 = vmatpush.msra.mxu0 %v1159
      %1206 = vmatpush.msra.mxu0 %v1157
      %1207 = vmatpush.msra.mxu0 %v1155
      %1208 = vmatpush.msra.mxu0 %v1153
      %1209 = vmatpush.msra.mxu0 %v1151
      %1210 = vmatpush.msra.mxu0 %v1149
      %1211 = vmatpush.msra.mxu0 %v1147
      %1212 = vmatpush.msra.mxu0 %v1145
      %1213 = vmatmul.f32.gmra.mxu0 %v1169
      %v1214 = vpop.f32.mrf.mxu0
      %v1215 = vadd.f32 %v1192, %v1214
      %1216 = vmatmul.f32.gmra.mxu0 %v1172
      %v1217 = vpop.f32.mrf.mxu0
      %v1218 = vadd.f32 %v1195, %v1217
      %1219 = vdwg.mxu0
      %1220 = vmatpush.msra.mxu0 %v1144
      %1221 = vmatpush.msra.mxu0 %v1142
      %1222 = vmatpush.msra.mxu0 %v1140
      %1223 = vmatpush.msra.mxu0 %v1138
      %1224 = vmatpush.msra.mxu0 %v1136
      %1225 = vmatpush.msra.mxu0 %v1134
      %1226 = vmatpush.msra.mxu0 %v1132
      %1227 = vmatpush.msra.mxu0 %v1130
      %1228 = vmatpush.msra.mxu0 %v1128
      %1229 = vmatpush.msra.mxu0 %v1126
      %1230 = vmatpush.msra.mxu0 %v1124
      %1231 = vmatpush.msra.mxu0 %v1122
      %1232 = vmatpush.msra.mxu0 %v1120
      %1233 = vmatpush.msra.mxu0 %v1118
      %1234 = vmatpush.msra.mxu0 %v1116
      %1235 = vmatpush.msra.mxu0 %v1114
      %1236 = vmatmul.f32.gmra.mxu0 %v1085
      %v1237 = vpop.f32.mrf.mxu0
      %v1238 = vadd.f32 0.0, %v1237
      %1239 = vmatmul.f32.gmra.mxu0 %v1088
      %v1240 = vpop.f32.mrf.mxu0
      %v1241 = vadd.f32 0.0, %v1240
      %1242 = vdwg.mxu0
      %1243 = vmatpush.msra.mxu0 0.0
      %1244 = vmatpush.msra.mxu0 0.0
      %1245 = vmatpush.msra.mxu0 0.0
      %1246 = vmatpush.msra.mxu0 0.0
      %1247 = vmatpush.msra.mxu0 0.0
      %1248 = vmatpush.msra.mxu0 %v1166
      %1249 = vmatpush.msra.mxu0 %v1164
      %1250 = vmatpush.msra.mxu0 %v1162
      %1251 = vmatpush.msra.mxu0 %v1160
      %1252 = vmatpush.msra.mxu0 %v1158
      %1253 = vmatpush.msra.mxu0 %v1156
      %1254 = vmatpush.msra.mxu0 %v1154
      %1255 = vmatpush.msra.mxu0 %v1152
      %1256 = vmatpush.msra.mxu0 %v1150
      %1257 = vmatpush.msra.mxu0 %v1148
      %1258 = vmatpush.msra.mxu0 %v1146
      %1259 = vmatmul.f32.gmra.mxu0 %v1169
      %v1260 = vpop.f32.mrf.mxu0
      %v1261 = vadd.f32 %v1238, %v1260
      %1262 = vmatmul.f32.gmra.mxu0 %v1172
      %v1263 = vpop.f32.mrf.mxu0
      %v1264 = vadd.f32 %v1241, %v1263
      %1265 = vdwg.mxu0
      %s1266 = scalar_lea.vmem %s4, 432
      %v1267 = vld [vmem:[%s1266] sm:$0xff]
      %v1268 = vld [vmem:[%s1266 + $0x8] sm:$0xff]
      %v1269 = vld [vmem:[%s1266 + $0x10] sm:$0xff]
      %v1270 = vld [vmem:[%s1266 + $0x18] sm:$0xff]
      %v1271 = vld [vmem:[%s1266 + $0x20] sm:$0xff]
      %v1272 = vld [vmem:[%s1266 + $0x28] sm:$0xff]
      %v1273 = vld [vmem:[%s1266 + $0x30] sm:$0xff]
      %v1274 = vld [vmem:[%s1266 + $0x38] sm:$0xff]
      %v1275 = vld [vmem:[%s1266 + $0x40] sm:$0xff]
      %v1276 = vld [vmem:[%s1266 + $0x48] sm:$0xff]
      %v1277 = vld [vmem:[%s1266 + $0x50] sm:$0xff]
      %v1278 = vld [vmem:[%s1266 + $0x58] sm:$0xff]
      %v1279 = vld [vmem:[%s1266 + $0x60] sm:$0xff]
      %v1280 = vld [vmem:[%s1266 + $0x68] sm:$0xff]
      %v1281 = vld [vmem:[%s1266 + $0x70] sm:$0xff]
      %v1282 = vld [vmem:[%s1266 + $0x78] sm:$0xff]
      %v1283 = vld [vmem:[%s1266 + $0x80] sm:$0xff]
      %v1284 = vld [vmem:[%s1266 + $0x88] sm:$0xff]
      %v1285 = vld [vmem:[%s1266 + $0x90] sm:$0xff]
      %v1286 = vld [vmem:[%s1266 + $0x98] sm:$0xff]
      %v1287 = vld [vmem:[%s1266 + $0xa0] sm:$0xff]
      %v1288 = vld [vmem:[%s1266 + $0xa8] sm:$0xff]
      %v1289 = vld [vmem:[%s1266 + $0xb0] sm:$0xff]
      %v1290 = vld [vmem:[%s1266 + $0xb8] sm:$0xff]
      %v1291 = vld [vmem:[%s1266 + $0xc0] sm:$0xff]
      %v1292 = vld [vmem:[%s1266 + $0xc8] sm:$0xff]
      %v1293 = vld [vmem:[%s1266 + $0xd0] sm:$0xff]
      %v1294 = vld [vmem:[%s1266 + $0xd8] sm:$0xff]
      %v1295 = vld [vmem:[%s1266 + $0xe0] sm:$0xff]
      %v1296 = vld [vmem:[%s1266 + $0xe8] sm:$0xff]
      %v1297 = vld [vmem:[%s1266 + $0xf0] sm:$0xff]
      %v1298 = vld [vmem:[%s1266 + $0xf8] sm:$0xff]
      %v1299 = vld [vmem:[%s1266 + $0x100] sm:$0xff]
      %v1300 = vld [vmem:[%s1266 + $0x108] sm:$0xff]
      %v1301 = vld [vmem:[%s1266 + $0x110] sm:$0xff]
      %v1302 = vld [vmem:[%s1266 + $0x118] sm:$0xff]
      %v1303 = vld [vmem:[%s1266 + $0x120] sm:$0xff]
      %v1304 = vld [vmem:[%s1266 + $0x128] sm:$0xff]
      %v1305 = vld [vmem:[%s1266 + $0x130] sm:$0xff]
      %v1306 = vld [vmem:[%s1266 + $0x138] sm:$0xff]
      %v1307 = vld [vmem:[%s1266 + $0x140] sm:$0xff]
      %v1308 = vld [vmem:[%s1266 + $0x148] sm:$0xff]
      %v1309 = vld [vmem:[%s1266 + $0x150] sm:$0xff]
      %v1310 = vld [vmem:[%s1266 + $0x158] sm:$0xff]
      %v1311 = vld [vmem:[%s1266 + $0x160] sm:$0xff]
      %v1312 = vld [vmem:[%s1266 + $0x168] sm:$0xff]
      %v1313 = vld [vmem:[%s1266 + $0x170] sm:$0xff]
      %v1314 = vld [vmem:[%s1266 + $0x178] sm:$0xff]
      %v1315 = vld [vmem:[%s1266 + $0x180] sm:$0xff]
      %v1316 = vld [vmem:[%s1266 + $0x188] sm:$0xff]
      %v1317 = vld [vmem:[%s1266 + $0x190] sm:$0xff]
      %v1318 = vld [vmem:[%s1266 + $0x198] sm:$0xff]
      %v1319 = vld [vmem:[%s1266 + $0x1a0] sm:$0xff]
      %v1320 = vld [vmem:[%s1266 + $0x1a8] sm:$0xff]
      %1321 = vmatpush.msra.mxu0 %v1297
      %1322 = vmatpush.msra.mxu0 %v1295
      %1323 = vmatpush.msra.mxu0 %v1293
      %1324 = vmatpush.msra.mxu0 %v1291
      %1325 = vmatpush.msra.mxu0 %v1289
      %1326 = vmatpush.msra.mxu0 %v1287
      %1327 = vmatpush.msra.mxu0 %v1285
      %1328 = vmatpush.msra.mxu0 %v1283
      %1329 = vmatpush.msra.mxu0 %v1281
      %1330 = vmatpush.msra.mxu0 %v1279
      %1331 = vmatpush.msra.mxu0 %v1277
      %1332 = vmatpush.msra.mxu0 %v1275
      %1333 = vmatpush.msra.mxu0 %v1273
      %1334 = vmatpush.msra.mxu0 %v1271
      %1335 = vmatpush.msra.mxu0 %v1269
      %1336 = vmatpush.msra.mxu0 %v1267
      %1337 = vmatmul.f32.gmra.mxu0 %v1085
      %v1338 = vpop.f32.mrf.mxu0
      %v1339 = vadd.f32 0.0, %v1338
      %1340 = vmatmul.f32.gmra.mxu0 %v1088
      %v1341 = vpop.f32.mrf.mxu0
      %v1342 = vadd.f32 0.0, %v1341
      %1343 = vdwg.mxu0
      %1344 = vmatpush.msra.mxu0 0.0
      %1345 = vmatpush.msra.mxu0 0.0
      %1346 = vmatpush.msra.mxu0 0.0
      %1347 = vmatpush.msra.mxu0 0.0
      %1348 = vmatpush.msra.mxu0 0.0
      %1349 = vmatpush.msra.mxu0 %v1319
      %1350 = vmatpush.msra.mxu0 %v1317
      %1351 = vmatpush.msra.mxu0 %v1315
      %1352 = vmatpush.msra.mxu0 %v1313
      %1353 = vmatpush.msra.mxu0 %v1311
      %1354 = vmatpush.msra.mxu0 %v1309
      %1355 = vmatpush.msra.mxu0 %v1307
      %1356 = vmatpush.msra.mxu0 %v1305
      %1357 = vmatpush.msra.mxu0 %v1303
      %1358 = vmatpush.msra.mxu0 %v1301
      %1359 = vmatpush.msra.mxu0 %v1299
      %1360 = vmatmul.f32.gmra.mxu0 %v1169
      %v1361 = vpop.f32.mrf.mxu0
      %v1362 = vadd.f32 %v1339, %v1361
      %1363 = vmatmul.f32.gmra.mxu0 %v1172
      %v1364 = vpop.f32.mrf.mxu0
      %v1365 = vadd.f32 %v1342, %v1364
      %1366 = vdwg.mxu0
      %1367 = vmatpush.msra.mxu0 %v1298
      %1368 = vmatpush.msra.mxu0 %v1296
      %1369 = vmatpush.msra.mxu0 %v1294
      %1370 = vmatpush.msra.mxu0 %v1292
      %1371 = vmatpush.msra.mxu0 %v1290
      %1372 = vmatpush.msra.mxu0 %v1288
      %1373 = vmatpush.msra.mxu0 %v1286
      %1374 = vmatpush.msra.mxu0 %v1284
      %1375 = vmatpush.msra.mxu0 %v1282
      %1376 = vmatpush.msra.mxu0 %v1280
      %1377 = vmatpush.msra.mxu0 %v1278
      %1378 = vmatpush.msra.mxu0 %v1276
      %1379 = vmatpush.msra.mxu0 %v1274
      %1380 = vmatpush.msra.mxu0 %v1272
      %1381 = vmatpush.msra.mxu0 %v1270
      %1382 = vmatpush.msra.mxu0 %v1268
      %1383 = vmatmul.f32.gmra.mxu0 %v1085
      %v1384 = vpop.f32.mrf.mxu0
      %v1385 = vadd.f32 0.0, %v1384
      %1386 = vmatmul.f32.gmra.mxu0 %v1088
      %v1387 = vpop.f32.mrf.mxu0
      %v1388 = vadd.f32 0.0, %v1387
      %1389 = vdwg.mxu0
      %1390 = vmatpush.msra.mxu0 0.0
      %1391 = vmatpush.msra.mxu0 0.0
      %1392 = vmatpush.msra.mxu0 0.0
      %1393 = vmatpush.msra.mxu0 0.0
      %1394 = vmatpush.msra.mxu0 0.0
      %1395 = vmatpush.msra.mxu0 %v1320
      %1396 = vmatpush.msra.mxu0 %v1318
      %1397 = vmatpush.msra.mxu0 %v1316
      %1398 = vmatpush.msra.mxu0 %v1314
      %1399 = vmatpush.msra.mxu0 %v1312
      %1400 = vmatpush.msra.mxu0 %v1310
      %1401 = vmatpush.msra.mxu0 %v1308
      %1402 = vmatpush.msra.mxu0 %v1306
      %1403 = vmatpush.msra.mxu0 %v1304
      %1404 = vmatpush.msra.mxu0 %v1302
      %1405 = vmatpush.msra.mxu0 %v1300
      %1406 = vmatmul.f32.gmra.mxu0 %v1169
      %v1407 = vpop.f32.mrf.mxu0
      %v1408 = vadd.f32 %v1385, %v1407
      %1409 = vmatmul.f32.gmra.mxu0 %v1172
      %v1410 = vpop.f32.mrf.mxu0
      %v1411 = vadd.f32 %v1388, %v1410
      %1412 = vdwg.mxu0
      %v1417 = vrot.slane %v1362, 1
      %v1418 = vrot.slane %v1365, 1
      %v1419 = vsel %vm597, %v1417, %v1418
      %v1420 = vrot.slane %v1408, 1
      %v1421 = vrot.slane %v1411, 1
      %v1422 = vsel %vm597, %v1420, %v1421
      %v1427 = vadd.f32 %v1215, %v1419
      %v1428 = vadd.f32 %v1261, %v1422
      %v1429 = vadd.f32 %v1218, %v1418
      %v1430 = vadd.f32 %v1264, %v1421
      %s1431 = scalar_lea.vmem %s4, 864
      %v1432 = vld [vmem:[%s1431] sm:$0xff]
      %v1433 = vld [vmem:[%s1431 + $0x8] sm:$0xff]
      %v1434 = vld [vmem:[%s1431 + $0x10] sm:$0xff]
      %v1435 = vld [vmem:[%s1431 + $0x18] sm:$0xff]
      %v1436 = vld [vmem:[%s1431 + $0x20] sm:$0xff]
      %v1437 = vld [vmem:[%s1431 + $0x28] sm:$0xff]
      %v1438 = vld [vmem:[%s1431 + $0x30] sm:$0xff]
      %v1439 = vld [vmem:[%s1431 + $0x38] sm:$0xff]
      %v1440 = vld [vmem:[%s1431 + $0x40] sm:$0xff]
      %v1441 = vld [vmem:[%s1431 + $0x48] sm:$0xff]
      %v1442 = vld [vmem:[%s1431 + $0x50] sm:$0xff]
      %v1443 = vld [vmem:[%s1431 + $0x58] sm:$0xff]
      %v1444 = vld [vmem:[%s1431 + $0x60] sm:$0xff]
      %v1445 = vld [vmem:[%s1431 + $0x68] sm:$0xff]
      %v1446 = vld [vmem:[%s1431 + $0x70] sm:$0xff]
      %v1447 = vld [vmem:[%s1431 + $0x78] sm:$0xff]
      %v1448 = vld [vmem:[%s1431 + $0x80] sm:$0xff]
      %v1449 = vld [vmem:[%s1431 + $0x88] sm:$0xff]
      %v1450 = vld [vmem:[%s1431 + $0x90] sm:$0xff]
      %v1451 = vld [vmem:[%s1431 + $0x98] sm:$0xff]
      %v1452 = vld [vmem:[%s1431 + $0xa0] sm:$0xff]
      %v1453 = vld [vmem:[%s1431 + $0xa8] sm:$0xff]
      %v1454 = vld [vmem:[%s1431 + $0xb0] sm:$0xff]
      %v1455 = vld [vmem:[%s1431 + $0xb8] sm:$0xff]
      %v1456 = vld [vmem:[%s1431 + $0xc0] sm:$0xff]
      %v1457 = vld [vmem:[%s1431 + $0xc8] sm:$0xff]
      %v1458 = vld [vmem:[%s1431 + $0xd0] sm:$0xff]
      %v1459 = vld [vmem:[%s1431 + $0xd8] sm:$0xff]
      %v1460 = vld [vmem:[%s1431 + $0xe0] sm:$0xff]
      %v1461 = vld [vmem:[%s1431 + $0xe8] sm:$0xff]
      %v1462 = vld [vmem:[%s1431 + $0xf0] sm:$0xff]
      %v1463 = vld [vmem:[%s1431 + $0xf8] sm:$0xff]
      %v1464 = vld [vmem:[%s1431 + $0x100] sm:$0xff]
      %v1465 = vld [vmem:[%s1431 + $0x108] sm:$0xff]
      %v1466 = vld [vmem:[%s1431 + $0x110] sm:$0xff]
      %v1467 = vld [vmem:[%s1431 + $0x118] sm:$0xff]
      %v1468 = vld [vmem:[%s1431 + $0x120] sm:$0xff]
      %v1469 = vld [vmem:[%s1431 + $0x128] sm:$0xff]
      %v1470 = vld [vmem:[%s1431 + $0x130] sm:$0xff]
      %v1471 = vld [vmem:[%s1431 + $0x138] sm:$0xff]
      %v1472 = vld [vmem:[%s1431 + $0x140] sm:$0xff]
      %v1473 = vld [vmem:[%s1431 + $0x148] sm:$0xff]
      %v1474 = vld [vmem:[%s1431 + $0x150] sm:$0xff]
      %v1475 = vld [vmem:[%s1431 + $0x158] sm:$0xff]
      %v1476 = vld [vmem:[%s1431 + $0x160] sm:$0xff]
      %v1477 = vld [vmem:[%s1431 + $0x168] sm:$0xff]
      %v1478 = vld [vmem:[%s1431 + $0x170] sm:$0xff]
      %v1479 = vld [vmem:[%s1431 + $0x178] sm:$0xff]
      %v1480 = vld [vmem:[%s1431 + $0x180] sm:$0xff]
      %v1481 = vld [vmem:[%s1431 + $0x188] sm:$0xff]
      %v1482 = vld [vmem:[%s1431 + $0x190] sm:$0xff]
      %v1483 = vld [vmem:[%s1431 + $0x198] sm:$0xff]
      %v1484 = vld [vmem:[%s1431 + $0x1a0] sm:$0xff]
      %v1485 = vld [vmem:[%s1431 + $0x1a8] sm:$0xff]
      %1486 = vmatpush.msra.mxu0 %v1462
      %1487 = vmatpush.msra.mxu0 %v1460
      %1488 = vmatpush.msra.mxu0 %v1458
      %1489 = vmatpush.msra.mxu0 %v1456
      %1490 = vmatpush.msra.mxu0 %v1454
      %1491 = vmatpush.msra.mxu0 %v1452
      %1492 = vmatpush.msra.mxu0 %v1450
      %1493 = vmatpush.msra.mxu0 %v1448
      %1494 = vmatpush.msra.mxu0 %v1446
      %1495 = vmatpush.msra.mxu0 %v1444
      %1496 = vmatpush.msra.mxu0 %v1442
      %1497 = vmatpush.msra.mxu0 %v1440
      %1498 = vmatpush.msra.mxu0 %v1438
      %1499 = vmatpush.msra.mxu0 %v1436
      %1500 = vmatpush.msra.mxu0 %v1434
      %1501 = vmatpush.msra.mxu0 %v1432
      %1502 = vmatmul.f32.gmra.mxu0 %v1085
      %v1503 = vpop.f32.mrf.mxu0
      %v1504 = vadd.f32 0.0, %v1503
      %1505 = vmatmul.f32.gmra.mxu0 %v1088
      %v1506 = vpop.f32.mrf.mxu0
      %v1507 = vadd.f32 0.0, %v1506
      %1508 = vdwg.mxu0
      %1509 = vmatpush.msra.mxu0 0.0
      %1510 = vmatpush.msra.mxu0 0.0
      %1511 = vmatpush.msra.mxu0 0.0
      %1512 = vmatpush.msra.mxu0 0.0
      %1513 = vmatpush.msra.mxu0 0.0
      %1514 = vmatpush.msra.mxu0 %v1484
      %1515 = vmatpush.msra.mxu0 %v1482
      %1516 = vmatpush.msra.mxu0 %v1480
      %1517 = vmatpush.msra.mxu0 %v1478
      %1518 = vmatpush.msra.mxu0 %v1476
      %1519 = vmatpush.msra.mxu0 %v1474
      %1520 = vmatpush.msra.mxu0 %v1472
      %1521 = vmatpush.msra.mxu0 %v1470
      %1522 = vmatpush.msra.mxu0 %v1468
      %1523 = vmatpush.msra.mxu0 %v1466
      %1524 = vmatpush.msra.mxu0 %v1464
      %1525 = vmatmul.f32.gmra.mxu0 %v1169
      %v1526 = vpop.f32.mrf.mxu0
      %v1527 = vadd.f32 %v1504, %v1526
      %1528 = vmatmul.f32.gmra.mxu0 %v1172
      %v1529 = vpop.f32.mrf.mxu0
      %v1530 = vadd.f32 %v1507, %v1529
      %1531 = vdwg.mxu0
      %1532 = vmatpush.msra.mxu0 %v1463
      %1533 = vmatpush.msra.mxu0 %v1461
      %1534 = vmatpush.msra.mxu0 %v1459
      %1535 = vmatpush.msra.mxu0 %v1457
      %1536 = vmatpush.msra.mxu0 %v1455
      %1537 = vmatpush.msra.mxu0 %v1453
      %1538 = vmatpush.msra.mxu0 %v1451
      %1539 = vmatpush.msra.mxu0 %v1449
      %1540 = vmatpush.msra.mxu0 %v1447
      %1541 = vmatpush.msra.mxu0 %v1445
      %1542 = vmatpush.msra.mxu0 %v1443
      %1543 = vmatpush.msra.mxu0 %v1441
      %1544 = vmatpush.msra.mxu0 %v1439
      %1545 = vmatpush.msra.mxu0 %v1437
      %1546 = vmatpush.msra.mxu0 %v1435
      %1547 = vmatpush.msra.mxu0 %v1433
      %1548 = vmatmul.f32.gmra.mxu0 %v1085
      %v1549 = vpop.f32.mrf.mxu0
      %v1550 = vadd.f32 0.0, %v1549
      %1551 = vmatmul.f32.gmra.mxu0 %v1088
      %v1552 = vpop.f32.mrf.mxu0
      %v1553 = vadd.f32 0.0, %v1552
      %1554 = vdwg.mxu0
      %1555 = vmatpush.msra.mxu0 0.0
      %1556 = vmatpush.msra.mxu0 0.0
      %1557 = vmatpush.msra.mxu0 0.0
      %1558 = vmatpush.msra.mxu0 0.0
      %1559 = vmatpush.msra.mxu0 0.0
      %1560 = vmatpush.msra.mxu0 %v1485
      %1561 = vmatpush.msra.mxu0 %v1483
      %1562 = vmatpush.msra.mxu0 %v1481
      %1563 = vmatpush.msra.mxu0 %v1479
      %1564 = vmatpush.msra.mxu0 %v1477
      %1565 = vmatpush.msra.mxu0 %v1475
      %1566 = vmatpush.msra.mxu0 %v1473
      %1567 = vmatpush.msra.mxu0 %v1471
      %1568 = vmatpush.msra.mxu0 %v1469
      %1569 = vmatpush.msra.mxu0 %v1467
      %1570 = vmatpush.msra.mxu0 %v1465
      %1571 = vmatmul.f32.gmra.mxu0 %v1169
      %v1572 = vpop.f32.mrf.mxu0
      %v1573 = vadd.f32 %v1550, %v1572
      %1574 = vmatmul.f32.gmra.mxu0 %v1172
      %v1575 = vpop.f32.mrf.mxu0
      %v1576 = vadd.f32 %v1553, %v1575
      %1577 = vdwg.mxu0
      %v1582 = vrot.slane %v1527, 2
      %v1583 = vrot.slane %v1530, 2
      %v1584 = vsel %vm703, %v1582, %v1583
      %v1585 = vrot.slane %v1573, 2
      %v1586 = vrot.slane %v1576, 2
      %v1587 = vsel %vm703, %v1585, %v1586
      %v1592 = vadd.f32 %v1427, %v1584
      %v1593 = vadd.f32 %v1428, %v1587
      %v1594 = vadd.f32 %v1429, %v1583
      %v1595 = vadd.f32 %v1430, %v1586
      %s1596 = scalar_lea.vmem %s4, 1296
      %v1597 = vld [vmem:[%s1596] sm:$0xff]
      %v1598 = vld [vmem:[%s1596 + $0x8] sm:$0xff]
      %v1599 = vld [vmem:[%s1596 + $0x10] sm:$0xff]
      %v1600 = vld [vmem:[%s1596 + $0x18] sm:$0xff]
      %v1601 = vld [vmem:[%s1596 + $0x20] sm:$0xff]
      %v1602 = vld [vmem:[%s1596 + $0x28] sm:$0xff]
      %v1603 = vld [vmem:[%s1596 + $0x30] sm:$0xff]
      %v1604 = vld [vmem:[%s1596 + $0x38] sm:$0xff]
      %v1605 = vld [vmem:[%s1596 + $0x40] sm:$0xff]
      %v1606 = vld [vmem:[%s1596 + $0x48] sm:$0xff]
      %v1607 = vld [vmem:[%s1596 + $0x50] sm:$0xff]
      %v1608 = vld [vmem:[%s1596 + $0x58] sm:$0xff]
      %v1609 = vld [vmem:[%s1596 + $0x60] sm:$0xff]
      %v1610 = vld [vmem:[%s1596 + $0x68] sm:$0xff]
      %v1611 = vld [vmem:[%s1596 + $0x70] sm:$0xff]
      %v1612 = vld [vmem:[%s1596 + $0x78] sm:$0xff]
      %v1613 = vld [vmem:[%s1596 + $0x80] sm:$0xff]
      %v1614 = vld [vmem:[%s1596 + $0x88] sm:$0xff]
      %v1615 = vld [vmem:[%s1596 + $0x90] sm:$0xff]
      %v1616 = vld [vmem:[%s1596 + $0x98] sm:$0xff]
      %v1617 = vld [vmem:[%s1596 + $0xa0] sm:$0xff]
      %v1618 = vld [vmem:[%s1596 + $0xa8] sm:$0xff]
      %v1619 = vld [vmem:[%s1596 + $0xb0] sm:$0xff]
      %v1620 = vld [vmem:[%s1596 + $0xb8] sm:$0xff]
      %v1621 = vld [vmem:[%s1596 + $0xc0] sm:$0xff]
      %v1622 = vld [vmem:[%s1596 + $0xc8] sm:$0xff]
      %v1623 = vld [vmem:[%s1596 + $0xd0] sm:$0xff]
      %v1624 = vld [vmem:[%s1596 + $0xd8] sm:$0xff]
      %v1625 = vld [vmem:[%s1596 + $0xe0] sm:$0xff]
      %v1626 = vld [vmem:[%s1596 + $0xe8] sm:$0xff]
      %v1627 = vld [vmem:[%s1596 + $0xf0] sm:$0xff]
      %v1628 = vld [vmem:[%s1596 + $0xf8] sm:$0xff]
      %v1629 = vld [vmem:[%s1596 + $0x100] sm:$0xff]
      %v1630 = vld [vmem:[%s1596 + $0x108] sm:$0xff]
      %v1631 = vld [vmem:[%s1596 + $0x110] sm:$0xff]
      %v1632 = vld [vmem:[%s1596 + $0x118] sm:$0xff]
      %v1633 = vld [vmem:[%s1596 + $0x120] sm:$0xff]
      %v1634 = vld [vmem:[%s1596 + $0x128] sm:$0xff]
      %v1635 = vld [vmem:[%s1596 + $0x130] sm:$0xff]
      %v1636 = vld [vmem:[%s1596 + $0x138] sm:$0xff]
      %v1637 = vld [vmem:[%s1596 + $0x140] sm:$0xff]
      %v1638 = vld [vmem:[%s1596 + $0x148] sm:$0xff]
      %v1639 = vld [vmem:[%s1596 + $0x150] sm:$0xff]
      %v1640 = vld [vmem:[%s1596 + $0x158] sm:$0xff]
      %v1641 = vld [vmem:[%s1596 + $0x160] sm:$0xff]
      %v1642 = vld [vmem:[%s1596 + $0x168] sm:$0xff]
      %v1643 = vld [vmem:[%s1596 + $0x170] sm:$0xff]
      %v1644 = vld [vmem:[%s1596 + $0x178] sm:$0xff]
      %v1645 = vld [vmem:[%s1596 + $0x180] sm:$0xff]
      %v1646 = vld [vmem:[%s1596 + $0x188] sm:$0xff]
      %v1647 = vld [vmem:[%s1596 + $0x190] sm:$0xff]
      %v1648 = vld [vmem:[%s1596 + $0x198] sm:$0xff]
      %v1649 = vld [vmem:[%s1596 + $0x1a0] sm:$0xff]
      %v1650 = vld [vmem:[%s1596 + $0x1a8] sm:$0xff]
      %1651 = vmatpush.msra.mxu0 %v1627
      %1652 = vmatpush.msra.mxu0 %v1625
      %1653 = vmatpush.msra.mxu0 %v1623
      %1654 = vmatpush.msra.mxu0 %v1621
      %1655 = vmatpush.msra.mxu0 %v1619
      %1656 = vmatpush.msra.mxu0 %v1617
      %1657 = vmatpush.msra.mxu0 %v1615
      %1658 = vmatpush.msra.mxu0 %v1613
      %1659 = vmatpush.msra.mxu0 %v1611
      %1660 = vmatpush.msra.mxu0 %v1609
      %1661 = vmatpush.msra.mxu0 %v1607
      %1662 = vmatpush.msra.mxu0 %v1605
      %1663 = vmatpush.msra.mxu0 %v1603
      %1664 = vmatpush.msra.mxu0 %v1601
      %1665 = vmatpush.msra.mxu0 %v1599
      %1666 = vmatpush.msra.mxu0 %v1597
      %1667 = vmatmul.f32.gmra.mxu0 %v1085
      %v1668 = vpop.f32.mrf.mxu0
      %v1669 = vadd.f32 0.0, %v1668
      %1670 = vmatmul.f32.gmra.mxu0 %v1088
      %v1671 = vpop.f32.mrf.mxu0
      %v1672 = vadd.f32 0.0, %v1671
      %1673 = vdwg.mxu0
      %1674 = vmatpush.msra.mxu0 0.0
      %1675 = vmatpush.msra.mxu0 0.0
      %1676 = vmatpush.msra.mxu0 0.0
      %1677 = vmatpush.msra.mxu0 0.0
      %1678 = vmatpush.msra.mxu0 0.0
      %1679 = vmatpush.msra.mxu0 %v1649
      %1680 = vmatpush.msra.mxu0 %v1647
      %1681 = vmatpush.msra.mxu0 %v1645
      %1682 = vmatpush.msra.mxu0 %v1643
      %1683 = vmatpush.msra.mxu0 %v1641
      %1684 = vmatpush.msra.mxu0 %v1639
      %1685 = vmatpush.msra.mxu0 %v1637
      %1686 = vmatpush.msra.mxu0 %v1635
      %1687 = vmatpush.msra.mxu0 %v1633
      %1688 = vmatpush.msra.mxu0 %v1631
      %1689 = vmatpush.msra.mxu0 %v1629
      %1690 = vmatmul.f32.gmra.mxu0 %v1169
      %v1691 = vpop.f32.mrf.mxu0
      %v1692 = vadd.f32 %v1669, %v1691
      %1693 = vmatmul.f32.gmra.mxu0 %v1172
      %v1694 = vpop.f32.mrf.mxu0
      %v1695 = vadd.f32 %v1672, %v1694
      %1696 = vdwg.mxu0
      %1697 = vmatpush.msra.mxu0 %v1628
      %1698 = vmatpush.msra.mxu0 %v1626
      %1699 = vmatpush.msra.mxu0 %v1624
      %1700 = vmatpush.msra.mxu0 %v1622
      %1701 = vmatpush.msra.mxu0 %v1620
      %1702 = vmatpush.msra.mxu0 %v1618
      %1703 = vmatpush.msra.mxu0 %v1616
      %1704 = vmatpush.msra.mxu0 %v1614
      %1705 = vmatpush.msra.mxu0 %v1612
      %1706 = vmatpush.msra.mxu0 %v1610
      %1707 = vmatpush.msra.mxu0 %v1608
      %1708 = vmatpush.msra.mxu0 %v1606
      %1709 = vmatpush.msra.mxu0 %v1604
      %1710 = vmatpush.msra.mxu0 %v1602
      %1711 = vmatpush.msra.mxu0 %v1600
      %1712 = vmatpush.msra.mxu0 %v1598
      %1713 = vmatmul.f32.gmra.mxu0 %v1085
      %v1714 = vpop.f32.mrf.mxu0
      %v1715 = vadd.f32 0.0, %v1714
      %1716 = vmatmul.f32.gmra.mxu0 %v1088
      %v1717 = vpop.f32.mrf.mxu0
      %v1718 = vadd.f32 0.0, %v1717
      %1719 = vdwg.mxu0
      %1720 = vmatpush.msra.mxu0 0.0
      %1721 = vmatpush.msra.mxu0 0.0
      %1722 = vmatpush.msra.mxu0 0.0
      %1723 = vmatpush.msra.mxu0 0.0
      %1724 = vmatpush.msra.mxu0 0.0
      %1725 = vmatpush.msra.mxu0 %v1650
      %1726 = vmatpush.msra.mxu0 %v1648
      %1727 = vmatpush.msra.mxu0 %v1646
      %1728 = vmatpush.msra.mxu0 %v1644
      %1729 = vmatpush.msra.mxu0 %v1642
      %1730 = vmatpush.msra.mxu0 %v1640
      %1731 = vmatpush.msra.mxu0 %v1638
      %1732 = vmatpush.msra.mxu0 %v1636
      %1733 = vmatpush.msra.mxu0 %v1634
      %1734 = vmatpush.msra.mxu0 %v1632
      %1735 = vmatpush.msra.mxu0 %v1630
      %1736 = vmatmul.f32.gmra.mxu0 %v1169
      %v1737 = vpop.f32.mrf.mxu0
      %v1738 = vadd.f32 %v1715, %v1737
      %1739 = vmatmul.f32.gmra.mxu0 %v1172
      %v1740 = vpop.f32.mrf.mxu0
      %v1741 = vadd.f32 %v1718, %v1740
      %1742 = vdwg.mxu0
      %v1747 = vrot.slane %v1692, 3
      %v1748 = vrot.slane %v1695, 3
      %v1749 = vsel %vm809, %v1747, %v1748
      %v1750 = vrot.slane %v1738, 3
      %v1751 = vrot.slane %v1741, 3
      %v1752 = vsel %vm809, %v1750, %v1751
      %v1757 = vadd.f32 %v1592, %v1749
      %v1758 = vadd.f32 %v1593, %v1752
      %v1759 = vadd.f32 %v1594, %v1748
      %v1760 = vadd.f32 %v1595, %v1751
      %s1761 = scalar_lea.vmem %s4, 1728
      %v1762 = vld [vmem:[%s1761] sm:$0xff]
      %v1763 = vld [vmem:[%s1761 + $0x8] sm:$0xff]
      %v1764 = vld [vmem:[%s1761 + $0x10] sm:$0xff]
      %v1765 = vld [vmem:[%s1761 + $0x18] sm:$0xff]
      %v1766 = vld [vmem:[%s1761 + $0x20] sm:$0xff]
      %v1767 = vld [vmem:[%s1761 + $0x28] sm:$0xff]
      %v1768 = vld [vmem:[%s1761 + $0x30] sm:$0xff]
      %v1769 = vld [vmem:[%s1761 + $0x38] sm:$0xff]
      %v1770 = vld [vmem:[%s1761 + $0x40] sm:$0xff]
      %v1771 = vld [vmem:[%s1761 + $0x48] sm:$0xff]
      %v1772 = vld [vmem:[%s1761 + $0x50] sm:$0xff]
      %v1773 = vld [vmem:[%s1761 + $0x58] sm:$0xff]
      %v1774 = vld [vmem:[%s1761 + $0x60] sm:$0xff]
      %v1775 = vld [vmem:[%s1761 + $0x68] sm:$0xff]
      %v1776 = vld [vmem:[%s1761 + $0x70] sm:$0xff]
      %v1777 = vld [vmem:[%s1761 + $0x78] sm:$0xff]
      %v1778 = vld [vmem:[%s1761 + $0x80] sm:$0xff]
      %v1779 = vld [vmem:[%s1761 + $0x88] sm:$0xff]
      %v1780 = vld [vmem:[%s1761 + $0x90] sm:$0xff]
      %v1781 = vld [vmem:[%s1761 + $0x98] sm:$0xff]
      %v1782 = vld [vmem:[%s1761 + $0xa0] sm:$0xff]
      %v1783 = vld [vmem:[%s1761 + $0xa8] sm:$0xff]
      %v1784 = vld [vmem:[%s1761 + $0xb0] sm:$0xff]
      %v1785 = vld [vmem:[%s1761 + $0xb8] sm:$0xff]
      %v1786 = vld [vmem:[%s1761 + $0xc0] sm:$0xff]
      %v1787 = vld [vmem:[%s1761 + $0xc8] sm:$0xff]
      %v1788 = vld [vmem:[%s1761 + $0xd0] sm:$0xff]
      %v1789 = vld [vmem:[%s1761 + $0xd8] sm:$0xff]
      %v1790 = vld [vmem:[%s1761 + $0xe0] sm:$0xff]
      %v1791 = vld [vmem:[%s1761 + $0xe8] sm:$0xff]
      %v1792 = vld [vmem:[%s1761 + $0xf0] sm:$0xff]
      %v1793 = vld [vmem:[%s1761 + $0xf8] sm:$0xff]
      %v1794 = vld [vmem:[%s1761 + $0x100] sm:$0xff]
      %v1795 = vld [vmem:[%s1761 + $0x108] sm:$0xff]
      %v1796 = vld [vmem:[%s1761 + $0x110] sm:$0xff]
      %v1797 = vld [vmem:[%s1761 + $0x118] sm:$0xff]
      %v1798 = vld [vmem:[%s1761 + $0x120] sm:$0xff]
      %v1799 = vld [vmem:[%s1761 + $0x128] sm:$0xff]
      %v1800 = vld [vmem:[%s1761 + $0x130] sm:$0xff]
      %v1801 = vld [vmem:[%s1761 + $0x138] sm:$0xff]
      %v1802 = vld [vmem:[%s1761 + $0x140] sm:$0xff]
      %v1803 = vld [vmem:[%s1761 + $0x148] sm:$0xff]
      %v1804 = vld [vmem:[%s1761 + $0x150] sm:$0xff]
      %v1805 = vld [vmem:[%s1761 + $0x158] sm:$0xff]
      %v1806 = vld [vmem:[%s1761 + $0x160] sm:$0xff]
      %v1807 = vld [vmem:[%s1761 + $0x168] sm:$0xff]
      %v1808 = vld [vmem:[%s1761 + $0x170] sm:$0xff]
      %v1809 = vld [vmem:[%s1761 + $0x178] sm:$0xff]
      %v1810 = vld [vmem:[%s1761 + $0x180] sm:$0xff]
      %v1811 = vld [vmem:[%s1761 + $0x188] sm:$0xff]
      %v1812 = vld [vmem:[%s1761 + $0x190] sm:$0xff]
      %v1813 = vld [vmem:[%s1761 + $0x198] sm:$0xff]
      %v1814 = vld [vmem:[%s1761 + $0x1a0] sm:$0xff]
      %v1815 = vld [vmem:[%s1761 + $0x1a8] sm:$0xff]
      %1816 = vmatpush.msra.mxu0 %v1792
      %1817 = vmatpush.msra.mxu0 %v1790
      %1818 = vmatpush.msra.mxu0 %v1788
      %1819 = vmatpush.msra.mxu0 %v1786
      %1820 = vmatpush.msra.mxu0 %v1784
      %1821 = vmatpush.msra.mxu0 %v1782
      %1822 = vmatpush.msra.mxu0 %v1780
      %1823 = vmatpush.msra.mxu0 %v1778
      %1824 = vmatpush.msra.mxu0 %v1776
      %1825 = vmatpush.msra.mxu0 %v1774
      %1826 = vmatpush.msra.mxu0 %v1772
      %1827 = vmatpush.msra.mxu0 %v1770
      %1828 = vmatpush.msra.mxu0 %v1768
      %1829 = vmatpush.msra.mxu0 %v1766
      %1830 = vmatpush.msra.mxu0 %v1764
      %1831 = vmatpush.msra.mxu0 %v1762
      %1832 = vmatmul.f32.gmra.mxu0 %v1085
      %v1833 = vpop.f32.mrf.mxu0
      %v1834 = vadd.f32 0.0, %v1833
      %1835 = vmatmul.f32.gmra.mxu0 %v1088
      %v1836 = vpop.f32.mrf.mxu0
      %v1837 = vadd.f32 0.0, %v1836
      %1838 = vdwg.mxu0
      %1839 = vmatpush.msra.mxu0 0.0
      %1840 = vmatpush.msra.mxu0 0.0
      %1841 = vmatpush.msra.mxu0 0.0
      %1842 = vmatpush.msra.mxu0 0.0
      %1843 = vmatpush.msra.mxu0 0.0
      %1844 = vmatpush.msra.mxu0 %v1814
      %1845 = vmatpush.msra.mxu0 %v1812
      %1846 = vmatpush.msra.mxu0 %v1810
      %1847 = vmatpush.msra.mxu0 %v1808
      %1848 = vmatpush.msra.mxu0 %v1806
      %1849 = vmatpush.msra.mxu0 %v1804
      %1850 = vmatpush.msra.mxu0 %v1802
      %1851 = vmatpush.msra.mxu0 %v1800
      %1852 = vmatpush.msra.mxu0 %v1798
      %1853 = vmatpush.msra.mxu0 %v1796
      %1854 = vmatpush.msra.mxu0 %v1794
      %1855 = vmatmul.f32.gmra.mxu0 %v1169
      %v1856 = vpop.f32.mrf.mxu0
      %v1857 = vadd.f32 %v1834, %v1856
      %1858 = vmatmul.f32.gmra.mxu0 %v1172
      %v1859 = vpop.f32.mrf.mxu0
      %v1860 = vadd.f32 %v1837, %v1859
      %1861 = vdwg.mxu0
      %1862 = vmatpush.msra.mxu0 %v1793
      %1863 = vmatpush.msra.mxu0 %v1791
      %1864 = vmatpush.msra.mxu0 %v1789
      %1865 = vmatpush.msra.mxu0 %v1787
      %1866 = vmatpush.msra.mxu0 %v1785
      %1867 = vmatpush.msra.mxu0 %v1783
      %1868 = vmatpush.msra.mxu0 %v1781
      %1869 = vmatpush.msra.mxu0 %v1779
      %1870 = vmatpush.msra.mxu0 %v1777
      %1871 = vmatpush.msra.mxu0 %v1775
      %1872 = vmatpush.msra.mxu0 %v1773
      %1873 = vmatpush.msra.mxu0 %v1771
      %1874 = vmatpush.msra.mxu0 %v1769
      %1875 = vmatpush.msra.mxu0 %v1767
      %1876 = vmatpush.msra.mxu0 %v1765
      %1877 = vmatpush.msra.mxu0 %v1763
      %1878 = vmatmul.f32.gmra.mxu0 %v1085
      %v1879 = vpop.f32.mrf.mxu0
      %v1880 = vadd.f32 0.0, %v1879
      %1881 = vmatmul.f32.gmra.mxu0 %v1088
      %v1882 = vpop.f32.mrf.mxu0
      %v1883 = vadd.f32 0.0, %v1882
      %1884 = vdwg.mxu0
      %1885 = vmatpush.msra.mxu0 0.0
      %1886 = vmatpush.msra.mxu0 0.0
      %1887 = vmatpush.msra.mxu0 0.0
      %1888 = vmatpush.msra.mxu0 0.0
      %1889 = vmatpush.msra.mxu0 0.0
      %1890 = vmatpush.msra.mxu0 %v1815
      %1891 = vmatpush.msra.mxu0 %v1813
      %1892 = vmatpush.msra.mxu0 %v1811
      %1893 = vmatpush.msra.mxu0 %v1809
      %1894 = vmatpush.msra.mxu0 %v1807
      %1895 = vmatpush.msra.mxu0 %v1805
      %1896 = vmatpush.msra.mxu0 %v1803
      %1897 = vmatpush.msra.mxu0 %v1801
      %1898 = vmatpush.msra.mxu0 %v1799
      %1899 = vmatpush.msra.mxu0 %v1797
      %1900 = vmatpush.msra.mxu0 %v1795
      %1901 = vmatmul.f32.gmra.mxu0 %v1169
      %v1902 = vpop.f32.mrf.mxu0
      %v1903 = vadd.f32 %v1880, %v1902
      %1904 = vmatmul.f32.gmra.mxu0 %v1172
      %v1905 = vpop.f32.mrf.mxu0
      %v1906 = vadd.f32 %v1883, %v1905
      %1907 = vdwg.mxu0
      %v1912 = vrot.slane %v1857, 4
      %v1913 = vrot.slane %v1860, 4
      %v1914 = vsel %vm915, %v1912, %v1913
      %v1915 = vrot.slane %v1903, 4
      %v1916 = vrot.slane %v1906, 4
      %v1917 = vsel %vm915, %v1915, %v1916
      %v1922 = vadd.f32 %v1757, %v1914
      %v1923 = vadd.f32 %v1758, %v1917
      %v1924 = vadd.f32 %v1759, %v1913
      %v1925 = vadd.f32 %v1760, %v1916
      %v1926 = vld [vmem:[%s5] sm:$0x3]
      %v1928 = vperm.slane %v1926, 0
      %v1929 = vperm.slane %v1926, 1
      %v1932 = vadd.f32 %v1922, %v1928
      %v1933 = vadd.f32 %v1923, %v1929
      %v1934 = vadd.f32 %v1924, %v1928
      %v1935 = vadd.f32 %v1925, %v1929
      %v1936 = vmax.f32 %v1932, 0.0
      %v1937 = vmax.f32 %v1933, 0.0
      %v1938 = vmax.f32 %v1934, 0.0
      %v1939 = vmax.f32 %v1935, 0.0
      %1944 = vrot.lane.b32.xlu0 %v1936, 112
      %v1945 = vpop.permute.xlu0 %1944
      %1946 = vrot.lane.b32.xlu0 %v1937, 112
      %v1947 = vpop.permute.xlu0 %1946
      %1948 = vrot.lane.b32.xlu0 %v1938, 112
      %v1949 = vpop.permute.xlu0 %1948
      %1950 = vrot.lane.b32.xlu0 %v1939, 112
      %v1951 = vpop.permute.xlu0 %1950
      %vm1952 = vcmask 916480
      %v1953 = vsel %vm1952, %v1945, %v1947
      %v1954 = vsel %vm1952, %v1949, %v1951
      %v1959 = vmax.f32 %v1936, %v1953
      %v1960 = vmax.f32 %v1937, %v1947
      %v1961 = vmax.f32 %v1938, %v1954
      %v1962 = vmax.f32 %v1939, %v1951
      %v1967 = vrot.slane %v1959, 1
      %v1968 = vrot.slane %v1961, 1
      %v1969 = vsel %vm597, %v1967, %v1968
      %v1970 = vrot.slane %v1960, 1
      %v1971 = vrot.slane %v1962, 1
      %v1972 = vsel %vm597, %v1970, %v1971
      %v1977 = vmax.f32 %v1959, %v1969
      %v1978 = vmax.f32 %v1960, %v1972
      %v1979 = vmax.f32 %v1961, %v1968
      %v1980 = vmax.f32 %v1962, %v1971
      %v1981 = vld [vmem:[%s6] sm:$0x1f]
      %vm1982 = vcmask 72704
      %v1984 = vsel %vm1982, %v1981, 0
      %vm1986 = vcmask 1040384
      %v1988 = vsel %vm1986, %v1979, 0
      %v1991 = vsel %vm1986, %v1980, 0
      %1993 = vmatpush.msra.mxu0 0.0
      %1994 = vmatpush.msra.mxu0 0.0
      %1995 = vmatpush.msra.mxu0 0.0
      %1996 = vmatpush.msra.mxu0 0.0
      %1997 = vmatpush.msra.mxu0 0.0
      %1998 = vmatpush.msra.mxu0 0.0
      %1999 = vmatpush.msra.mxu0 0.0
      %2000 = vmatpush.msra.mxu0 0.0
      %2001 = vmatpush.msra.mxu0 0.0
      %2002 = vmatpush.msra.mxu0 0.0
      %2003 = vmatpush.msra.mxu0 0.0
      %2004 = vmatpush.msra.mxu0 0.0
      %2005 = vmatpush.msra.mxu0 0.0
      %2006 = vmatpush.msra.mxu0 0.0
      %2007 = vmatpush.msra.mxu0 %v1988
      %2008 = vmatpush.msra.mxu0 %v1977
      %2009 = vmatmul.f32.gmra.mxu0 %v1984
      %v2010 = vpop.f32.mrf.mxu0
      %v2011 = vadd.f32 0.0, %v2010
      %2012 = vdwg.mxu0
      %2013 = vmatpush.msra.mxu0 0.0
      %2014 = vmatpush.msra.mxu0 0.0
      %2015 = vmatpush.msra.mxu0 0.0
      %2016 = vmatpush.msra.mxu0 0.0
      %2017 = vmatpush.msra.mxu0 0.0
      %2018 = vmatpush.msra.mxu0 0.0
      %2019 = vmatpush.msra.mxu0 0.0
      %2020 = vmatpush.msra.mxu0 0.0
      %2021 = vmatpush.msra.mxu0 0.0
      %2022 = vmatpush.msra.mxu0 0.0
      %2023 = vmatpush.msra.mxu0 0.0
      %2024 = vmatpush.msra.mxu0 0.0
      %2025 = vmatpush.msra.mxu0 0.0
      %2026 = vmatpush.msra.mxu0 0.0
      %2027 = vmatpush.msra.mxu0 %v1991
      %2028 = vmatpush.msra.mxu0 %v1978
      %2029 = vmatmul.f32.gmra.mxu0 %v1984
      %v2030 = vpop.f32.mrf.mxu0
      %v2031 = vadd.f32 0.0, %v2030
      %2032 = vdwg.mxu0
      %v2033 = vld [vmem:[%s7] sm:$0xff]
      %v2034 = vld [vmem:[%s7 + $0x8] sm:$0xff]
      %v2035 = vld [vmem:[%s7 + $0x10] sm:$0xff]
      %v2036 = vld [vmem:[%s7 + $0x18] sm:$0xff]
      %v2037 = vld [vmem:[%s7 + $0x20] sm:$0xff]
      %v2038 = vld [vmem:[%s7 + $0x28] sm:$0xff]
      %v2039 = vld [vmem:[%s7 + $0x30] sm:$0xff]
      %v2040 = vld [vmem:[%s7 + $0x38] sm:$0xff]
      %v2041 = vld [vmem:[%s7 + $0x40] sm:$0xff]
      %v2042 = vld [vmem:[%s7 + $0x48] sm:$0xff]
      %v2043 = vld [vmem:[%s7 + $0x50] sm:$0xff]
      %v2044 = vld [vmem:[%s7 + $0x58] sm:$0xff]
      %v2045 = vld [vmem:[%s7 + $0x60] sm:$0xff]
      %v2046 = vld [vmem:[%s7 + $0x68] sm:$0xff]
      %v2047 = vld [vmem:[%s7 + $0x70] sm:$0xff]
      %v2048 = vld [vmem:[%s7 + $0x78] sm:$0xff]
      %v2049 = vld [vmem:[%s7 + $0x80] sm:$0xff]
      %v2050 = vld [vmem:[%s7 + $0x88] sm:$0xff]
      %vm2051 = vcmask 130048
      %v2053 = vsel %vm2051, %v2031, 0
      %2055 = vmatpush.msra.mxu0 %v2048
      %2056 = vmatpush.msra.mxu0 %v2047
      %2057 = vmatpush.msra.mxu0 %v2046
      %2058 = vmatpush.msra.mxu0 %v2045
      %2059 = vmatpush.msra.mxu0 %v2044
      %2060 = vmatpush.msra.mxu0 %v2043
      %2061 = vmatpush.msra.mxu0 %v2042
      %2062 = vmatpush.msra.mxu0 %v2041
      %2063 = vmatpush.msra.mxu0 %v2040
      %2064 = vmatpush.msra.mxu0 %v2039
      %2065 = vmatpush.msra.mxu0 %v2038
      %2066 = vmatpush.msra.mxu0 %v2037
      %2067 = vmatpush.msra.mxu0 %v2036
      %2068 = vmatpush.msra.mxu0 %v2035
      %2069 = vmatpush.msra.mxu0 %v2034
      %2070 = vmatpush.msra.mxu0 %v2033
      %2071 = vmatmul.f32.gmra.mxu0 %v2011
      %v2072 = vpop.f32.mrf.mxu0
      %v2073 = vadd.f32 0.0, %v2072
      %2074 = vdwg.mxu0
      %2075 = vmatpush.msra.mxu0 0.0
      %2076 = vmatpush.msra.mxu0 0.0
      %2077 = vmatpush.msra.mxu0 0.0
      %2078 = vmatpush.msra.mxu0 0.0
      %2079 = vmatpush.msra.mxu0 0.0
      %2080 = vmatpush.msra.mxu0 0.0
      %2081 = vmatpush.msra.mxu0 0.0
      %2082 = vmatpush.msra.mxu0 0.0
      %2083 = vmatpush.msra.mxu0 0.0
      %2084 = vmatpush.msra.mxu0 0.0
      %2085 = vmatpush.msra.mxu0 0.0
      %2086 = vmatpush.msra.mxu0 0.0
      %2087 = vmatpush.msra.mxu0 0.0
      %2088 = vmatpush.msra.mxu0 0.0
      %2089 = vmatpush.msra.mxu0 %v2050
      %2090 = vmatpush.msra.mxu0 %v2049
      %2091 = vmatmul.f32.gmra.mxu0 %v2053
      %v2092 = vpop.f32.mrf.mxu0
      %v2093 = vadd.f32 %v2073, %v2092
      %2094 = vdwg.mxu0
      %s2095 = scalar_lea.vmem %s7, 144
      %v2096 = vld [vmem:[%s2095] sm:$0xff]
      %v2097 = vld [vmem:[%s2095 + $0x8] sm:$0xff]
      %v2098 = vld [vmem:[%s2095 + $0x10] sm:$0xff]
      %v2099 = vld [vmem:[%s2095 + $0x18] sm:$0xff]
      %v2100 = vld [vmem:[%s2095 + $0x20] sm:$0xff]
      %v2101 = vld [vmem:[%s2095 + $0x28] sm:$0xff]
      %v2102 = vld [vmem:[%s2095 + $0x30] sm:$0xff]
      %v2103 = vld [vmem:[%s2095 + $0x38] sm:$0xff]
      %v2104 = vld [vmem:[%s2095 + $0x40] sm:$0xff]
      %v2105 = vld [vmem:[%s2095 + $0x48] sm:$0xff]
      %v2106 = vld [vmem:[%s2095 + $0x50] sm:$0xff]
      %v2107 = vld [vmem:[%s2095 + $0x58] sm:$0xff]
      %v2108 = vld [vmem:[%s2095 + $0x60] sm:$0xff]
      %v2109 = vld [vmem:[%s2095 + $0x68] sm:$0xff]
      %v2110 = vld [vmem:[%s2095 + $0x70] sm:$0xff]
      %v2111 = vld [vmem:[%s2095 + $0x78] sm:$0xff]
      %v2112 = vld [vmem:[%s2095 + $0x80] sm:$0xff]
      %v2113 = vld [vmem:[%s2095 + $0x88] sm:$0xff]
      %2114 = vmatpush.msra.mxu0 %v2111
      %2115 = vmatpush.msra.mxu0 %v2110
      %2116 = vmatpush.msra.mxu0 %v2109
      %2117 = vmatpush.msra.mxu0 %v2108
      %2118 = vmatpush.msra.mxu0 %v2107
      %2119 = vmatpush.msra.mxu0 %v2106
      %2120 = vmatpush.msra.mxu0 %v2105
      %2121 = vmatpush.msra.mxu0 %v2104
      %2122 = vmatpush.msra.mxu0 %v2103
      %2123 = vmatpush.msra.mxu0 %v2102
      %2124 = vmatpush.msra.mxu0 %v2101
      %2125 = vmatpush.msra.mxu0 %v2100
      %2126 = vmatpush.msra.mxu0 %v2099
      %2127 = vmatpush.msra.mxu0 %v2098
      %2128 = vmatpush.msra.mxu0 %v2097
      %2129 = vmatpush.msra.mxu0 %v2096
      %2130 = vmatmul.f32.gmra.mxu0 %v2011
      %v2131 = vpop.f32.mrf.mxu0
      %v2132 = vadd.f32 0.0, %v2131
      %2133 = vdwg.mxu0
      %2134 = vmatpush.msra.mxu0 0.0
      %2135 = vmatpush.msra.mxu0 0.0
      %2136 = vmatpush.msra.mxu0 0.0
      %2137 = vmatpush.msra.mxu0 0.0
      %2138 = vmatpush.msra.mxu0 0.0
      %2139 = vmatpush.msra.mxu0 0.0
      %2140 = vmatpush.msra.mxu0 0.0
      %2141 = vmatpush.msra.mxu0 0.0
      %2142 = vmatpush.msra.mxu0 0.0
      %2143 = vmatpush.msra.mxu0 0.0
      %2144 = vmatpush.msra.mxu0 0.0
      %2145 = vmatpush.msra.mxu0 0.0
      %2146 = vmatpush.msra.mxu0 0.0
      %2147 = vmatpush.msra.mxu0 0.0
      %2148 = vmatpush.msra.mxu0 %v2113
      %2149 = vmatpush.msra.mxu0 %v2112
      %2150 = vmatmul.f32.gmra.mxu0 %v2053
      %v2151 = vpop.f32.mrf.mxu0
      %v2152 = vadd.f32 %v2132, %v2151
      %2153 = vdwg.mxu0
      %v2155 = vrot.slane %v2152, 1
      %v2157 = vadd.f32 %v2093, %v2155
      %s2158 = scalar_lea.vmem %s7, 288
      %v2159 = vld [vmem:[%s2158] sm:$0xff]
      %v2160 = vld [vmem:[%s2158 + $0x8] sm:$0xff]
      %v2161 = vld [vmem:[%s2158 + $0x10] sm:$0xff]
      %v2162 = vld [vmem:[%s2158 + $0x18] sm:$0xff]
      %v2163 = vld [vmem:[%s2158 + $0x20] sm:$0xff]
      %v2164 = vld [vmem:[%s2158 + $0x28] sm:$0xff]
      %v2165 = vld [vmem:[%s2158 + $0x30] sm:$0xff]
      %v2166 = vld [vmem:[%s2158 + $0x38] sm:$0xff]
      %v2167 = vld [vmem:[%s2158 + $0x40] sm:$0xff]
      %v2168 = vld [vmem:[%s2158 + $0x48] sm:$0xff]
      %v2169 = vld [vmem:[%s2158 + $0x50] sm:$0xff]
      %v2170 = vld [vmem:[%s2158 + $0x58] sm:$0xff]
      %v2171 = vld [vmem:[%s2158 + $0x60] sm:$0xff]
      %v2172 = vld [vmem:[%s2158 + $0x68] sm:$0xff]
      %v2173 = vld [vmem:[%s2158 + $0x70] sm:$0xff]
      %v2174 = vld [vmem:[%s2158 + $0x78] sm:$0xff]
      %v2175 = vld [vmem:[%s2158 + $0x80] sm:$0xff]
      %v2176 = vld [vmem:[%s2158 + $0x88] sm:$0xff]
      %2177 = vmatpush.msra.mxu0 %v2174
      %2178 = vmatpush.msra.mxu0 %v2173
      %2179 = vmatpush.msra.mxu0 %v2172
      %2180 = vmatpush.msra.mxu0 %v2171
      %2181 = vmatpush.msra.mxu0 %v2170
      %2182 = vmatpush.msra.mxu0 %v2169
      %2183 = vmatpush.msra.mxu0 %v2168
      %2184 = vmatpush.msra.mxu0 %v2167
      %2185 = vmatpush.msra.mxu0 %v2166
      %2186 = vmatpush.msra.mxu0 %v2165
      %2187 = vmatpush.msra.mxu0 %v2164
      %2188 = vmatpush.msra.mxu0 %v2163
      %2189 = vmatpush.msra.mxu0 %v2162
      %2190 = vmatpush.msra.mxu0 %v2161
      %2191 = vmatpush.msra.mxu0 %v2160
      %2192 = vmatpush.msra.mxu0 %v2159
      %2193 = vmatmul.f32.gmra.mxu0 %v2011
      %v2194 = vpop.f32.mrf.mxu0
      %v2195 = vadd.f32 0.0, %v2194
      %2196 = vdwg.mxu0
      %2197 = vmatpush.msra.mxu0 0.0
      %2198 = vmatpush.msra.mxu0 0.0
      %2199 = vmatpush.msra.mxu0 0.0
      %2200 = vmatpush.msra.mxu0 0.0
      %2201 = vmatpush.msra.mxu0 0.0
      %2202 = vmatpush.msra.mxu0 0.0
      %2203 = vmatpush.msra.mxu0 0.0
      %2204 = vmatpush.msra.mxu0 0.0
      %2205 = vmatpush.msra.mxu0 0.0
      %2206 = vmatpush.msra.mxu0 0.0
      %2207 = vmatpush.msra.mxu0 0.0
      %2208 = vmatpush.msra.mxu0 0.0
      %2209 = vmatpush.msra.mxu0 0.0
      %2210 = vmatpush.msra.mxu0 0.0
      %2211 = vmatpush.msra.mxu0 %v2176
      %2212 = vmatpush.msra.mxu0 %v2175
      %2213 = vmatmul.f32.gmra.mxu0 %v2053
      %v2214 = vpop.f32.mrf.mxu0
      %v2215 = vadd.f32 %v2195, %v2214
      %2216 = vdwg.mxu0
      %v2218 = vrot.slane %v2215, 2
      %v2220 = vadd.f32 %v2157, %v2218
      %s2221 = scalar_lea.vmem %s7, 432
      %v2222 = vld [vmem:[%s2221] sm:$0xff]
      %v2223 = vld [vmem:[%s2221 + $0x8] sm:$0xff]
      %v2224 = vld [vmem:[%s2221 + $0x10] sm:$0xff]
      %v2225 = vld [vmem:[%s2221 + $0x18] sm:$0xff]
      %v2226 = vld [vmem:[%s2221 + $0x20] sm:$0xff]
      %v2227 = vld [vmem:[%s2221 + $0x28] sm:$0xff]
      %v2228 = vld [vmem:[%s2221 + $0x30] sm:$0xff]
      %v2229 = vld [vmem:[%s2221 + $0x38] sm:$0xff]
      %v2230 = vld [vmem:[%s2221 + $0x40] sm:$0xff]
      %v2231 = vld [vmem:[%s2221 + $0x48] sm:$0xff]
      %v2232 = vld [vmem:[%s2221 + $0x50] sm:$0xff]
      %v2233 = vld [vmem:[%s2221 + $0x58] sm:$0xff]
      %v2234 = vld [vmem:[%s2221 + $0x60] sm:$0xff]
      %v2235 = vld [vmem:[%s2221 + $0x68] sm:$0xff]
      %v2236 = vld [vmem:[%s2221 + $0x70] sm:$0xff]
      %v2237 = vld [vmem:[%s2221 + $0x78] sm:$0xff]
      %v2238 = vld [vmem:[%s2221 + $0x80] sm:$0xff]
      %v2239 = vld [vmem:[%s2221 + $0x88] sm:$0xff]
      %2240 = vmatpush.msra.mxu0 %v2237
      %2241 = vmatpush.msra.mxu0 %v2236
      %2242 = vmatpush.msra.mxu0 %v2235
      %2243 = vmatpush.msra.mxu0 %v2234
      %2244 = vmatpush.msra.mxu0 %v2233
      %2245 = vmatpush.msra.mxu0 %v2232
      %2246 = vmatpush.msra.mxu0 %v2231
      %2247 = vmatpush.msra.mxu0 %v2230
      %2248 = vmatpush.msra.mxu0 %v2229
      %2249 = vmatpush.msra.mxu0 %v2228
      %2250 = vmatpush.msra.mxu0 %v2227
      %2251 = vmatpush.msra.mxu0 %v2226
      %2252 = vmatpush.msra.mxu0 %v2225
      %2253 = vmatpush.msra.mxu0 %v2224
      %2254 = vmatpush.msra.mxu0 %v2223
      %2255 = vmatpush.msra.mxu0 %v2222
      %2256 = vmatmul.f32.gmra.mxu0 %v2011
      %v2257 = vpop.f32.mrf.mxu0
      %v2258 = vadd.f32 0.0, %v2257
      %2259 = vdwg.mxu0
      %2260 = vmatpush.msra.mxu0 0.0
      %2261 = vmatpush.msra.mxu0 0.0
      %2262 = vmatpush.msra.mxu0 0.0
      %2263 = vmatpush.msra.mxu0 0.0
      %2264 = vmatpush.msra.mxu0 0.0
      %2265 = vmatpush.msra.mxu0 0.0
      %2266 = vmatpush.msra.mxu0 0.0
      %2267 = vmatpush.msra.mxu0 0.0
      %2268 = vmatpush.msra.mxu0 0.0
      %2269 = vmatpush.msra.mxu0 0.0
      %2270 = vmatpush.msra.mxu0 0.0
      %2271 = vmatpush.msra.mxu0 0.0
      %2272 = vmatpush.msra.mxu0 0.0
      %2273 = vmatpush.msra.mxu0 0.0
      %2274 = vmatpush.msra.mxu0 %v2239
      %2275 = vmatpush.msra.mxu0 %v2238
      %2276 = vmatmul.f32.gmra.mxu0 %v2053
      %v2277 = vpop.f32.mrf.mxu0
      %v2278 = vadd.f32 %v2258, %v2277
      %2279 = vdwg.mxu0
      %v2281 = vrot.slane %v2278, 3
      %v2283 = vadd.f32 %v2220, %v2281
      %s2284 = scalar_lea.vmem %s7, 576
      %v2285 = vld [vmem:[%s2284] sm:$0xff]
      %v2286 = vld [vmem:[%s2284 + $0x8] sm:$0xff]
      %v2287 = vld [vmem:[%s2284 + $0x10] sm:$0xff]
      %v2288 = vld [vmem:[%s2284 + $0x18] sm:$0xff]
      %v2289 = vld [vmem:[%s2284 + $0x20] sm:$0xff]
      %v2290 = vld [vmem:[%s2284 + $0x28] sm:$0xff]
      %v2291 = vld [vmem:[%s2284 + $0x30] sm:$0xff]
      %v2292 = vld [vmem:[%s2284 + $0x38] sm:$0xff]
      %v2293 = vld [vmem:[%s2284 + $0x40] sm:$0xff]
      %v2294 = vld [vmem:[%s2284 + $0x48] sm:$0xff]
      %v2295 = vld [vmem:[%s2284 + $0x50] sm:$0xff]
      %v2296 = vld [vmem:[%s2284 + $0x58] sm:$0xff]
      %v2297 = vld [vmem:[%s2284 + $0x60] sm:$0xff]
      %v2298 = vld [vmem:[%s2284 + $0x68] sm:$0xff]
      %v2299 = vld [vmem:[%s2284 + $0x70] sm:$0xff]
      %v2300 = vld [vmem:[%s2284 + $0x78] sm:$0xff]
      %v2301 = vld [vmem:[%s2284 + $0x80] sm:$0xff]
      %v2302 = vld [vmem:[%s2284 + $0x88] sm:$0xff]
      %2303 = vmatpush.msra.mxu0 %v2300
      %2304 = vmatpush.msra.mxu0 %v2299
      %2305 = vmatpush.msra.mxu0 %v2298
      %2306 = vmatpush.msra.mxu0 %v2297
      %2307 = vmatpush.msra.mxu0 %v2296
      %2308 = vmatpush.msra.mxu0 %v2295
      %2309 = vmatpush.msra.mxu0 %v2294
      %2310 = vmatpush.msra.mxu0 %v2293
      %2311 = vmatpush.msra.mxu0 %v2292
      %2312 = vmatpush.msra.mxu0 %v2291
      %2313 = vmatpush.msra.mxu0 %v2290
      %2314 = vmatpush.msra.mxu0 %v2289
      %2315 = vmatpush.msra.mxu0 %v2288
      %2316 = vmatpush.msra.mxu0 %v2287
      %2317 = vmatpush.msra.mxu0 %v2286
      %2318 = vmatpush.msra.mxu0 %v2285
      %2319 = vmatmul.f32.gmra.mxu0 %v2011
      %v2320 = vpop.f32.mrf.mxu0
      %v2321 = vadd.f32 0.0, %v2320
      %2322 = vdwg.mxu0
      %2323 = vmatpush.msra.mxu0 0.0
      %2324 = vmatpush.msra.mxu0 0.0
      %2325 = vmatpush.msra.mxu0 0.0
      %2326 = vmatpush.msra.mxu0 0.0
      %2327 = vmatpush.msra.mxu0 0.0
      %2328 = vmatpush.msra.mxu0 0.0
      %2329 = vmatpush.msra.mxu0 0.0
      %2330 = vmatpush.msra.mxu0 0.0
      %2331 = vmatpush.msra.mxu0 0.0
      %2332 = vmatpush.msra.mxu0 0.0
      %2333 = vmatpush.msra.mxu0 0.0
      %2334 = vmatpush.msra.mxu0 0.0
      %2335 = vmatpush.msra.mxu0 0.0
      %2336 = vmatpush.msra.mxu0 0.0
      %2337 = vmatpush.msra.mxu0 %v2302
      %2338 = vmatpush.msra.mxu0 %v2301
      %2339 = vmatmul.f32.gmra.mxu0 %v2053
      %v2340 = vpop.f32.mrf.mxu0
      %v2341 = vadd.f32 %v2321, %v2340
      %2342 = vdwg.mxu0
      %v2344 = vrot.slane %v2341, 4
      %v2346 = vadd.f32 %v2283, %v2344
      %v2347 = vld [vmem:[%s8] sm:$0x1]
      %v2348 = vadd.f32 %v2346, %v2347
      %v2349 = vmax.f32 %v2348, 0.0
      %v2350 = vld [vmem:[%s9] sm:$0xff]
      %v2351 = vld [vmem:[%s9 + $0x8] sm:$0xff]
      %v2352 = vld [vmem:[%s9 + $0x10] sm:$0xff]
      %v2353 = vld [vmem:[%s9 + $0x18] sm:$0xff]
      %v2354 = vld [vmem:[%s9 + $0x20] sm:$0xff]
      %v2355 = vld [vmem:[%s9 + $0x28] sm:$0xff]
      %v2356 = vld [vmem:[%s9 + $0x30] sm:$0xff]
      %v2357 = vld [vmem:[%s9 + $0x38] sm:$0xff]
      %v2358 = vld [vmem:[%s9 + $0x40] sm:$0xff]
      %v2359 = vld [vmem:[%s9 + $0x48] sm:$0xff]
      %v2360 = vld [vmem:[%s9 + $0x50] sm:$0xff]
      %v2361 = vld [vmem:[%s9 + $0x58] sm:$0xff]
      %v2362 = vld [vmem:[%s9 + $0x60] sm:$0xff]
      %v2363 = vld [vmem:[%s9 + $0x68] sm:$0xff]
      %v2364 = vld [vmem:[%s9 + $0x70] sm:$0xff]
      %v2365 = vld [vmem:[%s9 + $0x78] sm:$0xff]
      %v2366 = vld [vmem:[%s10] sm:$0x1]
      %2367 = vmatpush.msra.mxu0 %v2365
      %2368 = vmatpush.msra.mxu0 %v2364
      %2369 = vmatpush.msra.mxu0 %v2363
      %2370 = vmatpush.msra.mxu0 %v2362
      %2371 = vmatpush.msra.mxu0 %v2361
      %2372 = vmatpush.msra.mxu0 %v2360
      %2373 = vmatpush.msra.mxu0 %v2359
      %2374 = vmatpush.msra.mxu0 %v2358
      %2375 = vmatpush.msra.mxu0 %v2357
      %2376 = vmatpush.msra.mxu0 %v2356
      %2377 = vmatpush.msra.mxu0 %v2355
      %2378 = vmatpush.msra.mxu0 %v2354
      %2379 = vmatpush.msra.mxu0 %v2353
      %2380 = vmatpush.msra.mxu0 %v2352
      %2381 = vmatpush.msra.mxu0 %v2351
      %2382 = vmatpush.msra.mxu0 %v2350
      %2383 = vmatmul.f32.gmra.mxu0 %v2349
      %v2384 = vpop.f32.mrf.mxu0
      %v2385 = vadd.f32 %v2366, %v2384
      %2386 = vdwg.mxu0
      %v2387 = vmax.f32 %v2385, 0.0
      %v2388 = vld [vmem:[%s11] sm:$0xff]
      %v2389 = vld [vmem:[%s11 + $0x8] sm:$0xff]
      %v2390 = vld [vmem:[%s11 + $0x10] sm:$0xff]
      %v2391 = vld [vmem:[%s11 + $0x18] sm:$0xff]
      %v2392 = vld [vmem:[%s11 + $0x20] sm:$0xff]
      %v2393 = vld [vmem:[%s11 + $0x28] sm:$0xff]
      %v2394 = vld [vmem:[%s11 + $0x30] sm:$0xff]
      %v2395 = vld [vmem:[%s11 + $0x38] sm:$0xff]
      %v2396 = vld [vmem:[%s11 + $0x40] sm:$0xff]
      %v2397 = vld [vmem:[%s11 + $0x48] sm:$0xff]
      %v2398 = vld [vmem:[%s11 + $0x50] sm:$0xff]
      %v2399 = vld [vmem:[%s11 + $0x58] sm:$0xff]
      %v2400 = vld [vmem:[%s11 + $0x60] sm:$0xff]
      %v2401 = vld [vmem:[%s11 + $0x68] sm:$0xff]
      %v2402 = vld [vmem:[%s11 + $0x70] sm:$0xff]
      %v2403 = vld [vmem:[%s11 + $0x78] sm:$0xff]
      %v2404 = vld [vmem:[%s12] sm:$0x1]
      %2405 = vmatpush.msra.mxu0 %v2403
      %2406 = vmatpush.msra.mxu0 %v2402
      %2407 = vmatpush.msra.mxu0 %v2401
      %2408 = vmatpush.msra.mxu0 %v2400
      %2409 = vmatpush.msra.mxu0 %v2399
      %2410 = vmatpush.msra.mxu0 %v2398
      %2411 = vmatpush.msra.mxu0 %v2397
      %2412 = vmatpush.msra.mxu0 %v2396
      %2413 = vmatpush.msra.mxu0 %v2395
      %2414 = vmatpush.msra.mxu0 %v2394
      %2415 = vmatpush.msra.mxu0 %v2393
      %2416 = vmatpush.msra.mxu0 %v2392
      %2417 = vmatpush.msra.mxu0 %v2391
      %2418 = vmatpush.msra.mxu0 %v2390
      %2419 = vmatpush.msra.mxu0 %v2389
      %2420 = vmatpush.msra.mxu0 %v2388
      %2421 = vmatmul.f32.gmra.mxu0 %v2387
      %v2422 = vpop.f32.mrf.mxu0
      %v2423 = vadd.f32 %v2404, %v2422
      %2424 = vdwg.mxu0
      %v2425 = vperm.slane %v2423, 0
      %2426 = vst [vmem:[%s438] sm:$0xff] %v2425
      %p2427 = scmp.lt.s32.totalorder %s24, 7
      %s2428 = scalar_select %p2427, %s24, 7
      %s2429 = smul.addr %s2428, 8
      %s2430 = scalar_lea.vmem %s13, %s2429
      // Predicated region
      $region73: #{lenet_forward.1} parent=71 // pred_check
        %p2431 = pneg %p320
      $region74: #{lenet_forward.1} parent=71 // pred_check_branch
        %2433 = sbr.rel (%p2431) target = $region76
      $region75: #{lenet_forward.1} parent=71 // pred_region
        _
      $region76: #{lenet_forward.1} parent=71 // pred_fallthru
        _
    $region72: #{lenet_forward.1} parent=5 // pred_fallthru
      _
    %p2434 = scmp.le.s32.totalorder 2, %s19
    // Predicated region
    $region77: #{lenet_forward.1} parent=5 // pred_check
      %p2435 = pneg %p2434
    $region78: #{lenet_forward.1} parent=5 // pred_check_branch
      %2437 = sbr.rel (%p2435) target = $region80
    $region79: #{lenet_forward.1} parent=5 // pred_region
      %s2438 = ssub.s32 %s19, 2
      // Predicated region
      $region81: #{lenet_forward.1} parent=79 // pred_check
        %p2439 = pneg %p326
      $region82: #{lenet_forward.1} parent=79 // pred_check_branch
        %2441 = sbr.rel (%p2439) target = $region84
      $region83: #{lenet_forward.1} parent=79 // pred_region
        %p2442 = scmp.lt.s32.totalorder %s25, 7
        %s2443 = scalar_select %p2442, %s25, 7
        %s2444 = smul.addr %s2443, 8
        %s2445 = scalar_lea.vmem %s13, %s2444
      $region84: #{lenet_forward.1} parent=79 // pred_fallthru
        _
    $region80: #{lenet_forward.1} parent=5 // pred_fallthru
      _
  $region6: #{lenet_forward.1} parent=0 // loop_footer
    %s23 = sadd.s32 1, %s19
  $region7: #{lenet_forward.1} parent=0 // loop_footer_branch
    %18 = sbr.rel target = $region3
  $region8: #{lenet_forward.1} parent=0 // loop_exit
    _

</llo_original>
